<compile_context>
chip_gen: v5e
topology: v5e:2x2
jax: 0.10.0
libtpu: 0.0.40
codegen_flags: <defaults>
</compile_context>

<pallas_src>
import jax
import jax.numpy as jnp
from jax.experimental import pallas as pl
from jax.experimental.pallas import tpu as pltpu


def _round_up(x, m):
    return ((x + m - 1) // m) * m


def _mlp_kernel(x_ref, w1_ref, b1_ref, w2_ref, b2_ref, w3_ref, b3_ref, o_ref):
    # fc1 + ReLU  (bf16 operands, f32 MXU accumulation, f32 bias/activation)
    h1 = jnp.dot(x_ref[...], w1_ref[...], preferred_element_type=jnp.float32)
    h1 = jnp.maximum(h1 + b1_ref[...], 0.0)
    # fc2 + ReLU
    h2 = jnp.dot(h1.astype(jnp.bfloat16), w2_ref[...],
                 preferred_element_type=jnp.float32)
    h2 = jnp.maximum(h2 + b2_ref[...], 0.0)
    # fc3 (logits, no activation)
    out = jnp.dot(h2.astype(jnp.bfloat16), w3_ref[...],
                  preferred_element_type=jnp.float32)
    o_ref[...] = (out + b3_ref[...]).astype(o_ref.dtype)


def _vmem_cap_bytes():
    """~75% of physical VMEM: ~96 MiB on v5e/v6e, ~48 MiB on v7x."""
    try:
        phys = int(pltpu.get_tpu_info().vmem_capacity_bytes)
        return min((phys * 3) // 4, 100 << 20)
    except Exception:
        return 48 << 20  # conservative (v7x-safe) fallback


def prepare_params(params):
    """One-time padding + bf16 casting of the weights.

    Call once (and cache the result); only x-dependent work happens per forward.
    Accepts biases of shape (depth,) or (1, depth).
    """
    w1, b1, w2, b2, w3, b3 = params
    in_dim, depth = w1.shape
    out_dim = w3.shape[1]

    d_pad = _round_up(depth, 128)
    if d_pad > 128 and d_pad % 256 == 128:
        d_pad += 128                      # 256-wide MXU columns on v6e/v7x
    out_pad = _round_up(max(out_dim, 128), 128)   # 10 -> 128 (lane-dense stores)

    bf16, f32 = jnp.bfloat16, jnp.float32
    b1 = jnp.asarray(b1, f32).reshape(1, -1)
    b2 = jnp.asarray(b2, f32).reshape(1, -1)
    b3 = jnp.asarray(b3, f32).reshape(1, -1)

    w1p = jnp.zeros((in_dim, d_pad), bf16).at[:, :depth].set(w1.astype(bf16))
    b1p = jnp.zeros((1, d_pad), f32).at[:, :depth].set(b1)
    w2p = jnp.zeros((d_pad, d_pad), bf16).at[:depth, :depth].set(w2.astype(bf16))
    b2p = jnp.zeros((1, d_pad), f32).at[:, :depth].set(b2)
    w3p = jnp.zeros((d_pad, out_pad), bf16).at[:depth, :out_dim].set(w3.astype(bf16))
    b3p = jnp.zeros((1, out_pad), f32).at[:, :out_dim].set(b3)

    meta = dict(in_dim=in_dim, depth=depth, out_dim=out_dim,
                d_pad=d_pad, out_pad=out_pad)
    return (w1p, b1p, w2p, b2p, w3p, b3p), meta


def _pick_tile_b(B, in_dim, d_pad, out_pad, resident_bytes, vmem_cap):
    if B < 256:
        # bf16 packs 2 rows/sublane -> 16-row minimum for clean packed layout.
        return _round_up(max(B, 1), 16)
    tile = 128
    for t in (1024, 512, 256, 128):
        b_pad = _round_up(B, t)
        io = 2 * t * in_dim * 2 + 2 * t * out_pad * 2      # double-buffered x/out (bf16)
        act = 2 * t * d_pad * 4 + t * out_pad * 4           # f32 intermediates
        if int(1.25 * (resident_bytes + io + act)) > vmem_cap:
            continue
        if b_pad > int(1.15 * B) and t > 128:
            continue                                        # too much zero-row waste
        tile = t
        break
    # Keep >= 2 grid steps so v7x's two TensorCores both get work.
    while _round_up(B, tile) // tile < 2 and tile > 128:
        tile //= 2
    return tile


def _run_pallas(xp, prepped_params, *, tile_b, b_pad, in_dim, d_pad, out_pad,
                vmem_cap):
    w1p, b1p, w2p, b2p, w3p, b3p = prepped_params
    grid = (b_pad // tile_b,)

    w_bytes = 2 * (in_dim * d_pad + d_pad * d_pad + d_pad * out_pad)
    bias_bytes = 4 * (2 * d_pad + out_pad)
    io_bytes = 2 * tile_b * in_dim * 2 + 2 * tile_b * out_pad * 2
    act_bytes = 2 * tile_b * d_pad * 4 + tile_b * out_pad * 4

    flops = 2 * b_pad * (in_dim * d_pad + d_pad * d_pad + d_pad * out_pad)
    bytes_accessed = (b_pad * in_dim * 2 + w_bytes + bias_bytes
                      + b_pad * out_pad * 2)

    # TODO(synk): for depth >= ~2048 on v7x, K-tile fc2 (w2 as (TK, D_PAD)) over
    # an innermost "arbitrary" reduction axis with an f32 scratch accumulator
    # instead of keeping w2 fully VMEM-resident.

    def build(weight_bufs):
        if weight_bufs == 1:
            def resident(shape):
                return pl.BlockSpec(shape, lambda i: (0, 0),
                                    pipeline_mode=pl.Buffered(1))
        else:
            def resident(shape):
                return pl.BlockSpec(shape, lambda i: (0, 0))

        need = weight_bufs * (w_bytes + bias_bytes) + io_bytes + act_bytes
        vmem_limit = min(max(int(1.25 * need), 16 << 20), vmem_cap)

        return pl.pallas_call(
            _mlp_kernel,
            out_shape=jax.ShapeDtypeStruct((b_pad, out_pad), jnp.bfloat16),
            grid_spec=pltpu.PrefetchScalarGridSpec(
                num_scalar_prefetch=0,
                grid=grid,
                in_specs=[
                    pl.BlockSpec((tile_b, in_dim), lambda i: (i, 0)),  # x tile
                    resident((in_dim, d_pad)),                         # w1
                    resident((1, d_pad)),                              # b1
                    resident((d_pad, d_pad)),                          # w2
                    resident((1, d_pad)),                              # b2
                    resident((d_pad, out_pad)),                        # w3
                    resident((1, out_pad)),                            # b3
                ],
                out_specs=pl.BlockSpec((tile_b, out_pad), lambda i: (i, 0)),
            ),
            compiler_params=pltpu.CompilerParams(
                dimension_semantics=("parallel",),
                vmem_limit_bytes=vmem_limit,
            ),
            cost_estimate=pl.CostEstimate(
                flops=flops, transcendentals=0, bytes_accessed=bytes_accessed),
        )

    try:
        # Single-buffer the constant-index weight/bias blocks (index never changes).
        return build(1)(xp, w1p, b1p, w2p, b2p, w3p, b3p)
    except Exception:
        # Fallback: default double-buffering if Buffered(1) is rejected here.
        return build(2)(xp, w1p, b1p, w2p, b2p, w3p, b3p)


def net_forward(x, prepped_params, meta):
    """Forward pass of Net. x: [B, 1, 28, 28] or [B, 784]."""
    in_dim, out_dim = meta["in_dim"], meta["out_dim"]
    d_pad, out_pad = meta["d_pad"], meta["out_pad"]

    B = x.shape[0]
    x_flat = jnp.reshape(x, (B, -1)).astype(jnp.bfloat16)   # flatten(start_dim=1)
    assert x_flat.shape[1] == in_dim

    vmem_cap = _vmem_cap_bytes()
    resident_bytes = (2 * (in_dim * d_pad + d_pad * d_pad + d_pad * out_pad)
                      + 4 * (2 * d_pad + out_pad))
    tile_b = _pick_tile_b(B, in_dim, d_pad, out_pad, resident_bytes, vmem_cap)
    b_pad = _round_up(B, tile_b)

    if b_pad != B:
        xp = jnp.zeros((b_pad, in_dim), jnp.bfloat16).at[:B].set(x_flat)
    else:
        xp = x_flat

    out_padded = _run_pallas(xp, prepped_params, tile_b=tile_b, b_pad=b_pad,
                             in_dim=in_dim, d_pad=d_pad, out_pad=out_pad,
                             vmem_cap=vmem_cap)

    # Slice off batch padding and the padded logit columns; return f32 logits.
    return out_padded[:B, :out_dim].astype(jnp.float32)


def init_params(key, depth, w_std=0.1, b_std=0.05):
    """Deterministic synthetic parameters matching Net(depth, w_std, b_std)."""
    k1, k2, k3, k4, k5, k6 = jax.random.split(key, 6)
    # Stored transposed: [in_features, out_features]
    w1 = w_std * jax.random.normal(k1, (784, depth), jnp.float32)
    b1 = b_std * jax.random.normal(k2, (depth,), jnp.float32)
    w2 = w_std * jax.random.normal(k3, (depth, depth), jnp.float32)
    b2 = b_std * jax.random.normal(k4, (depth,), jnp.float32)
    w3 = w_std * jax.random.normal(k5, (depth, 10), jnp.float32)
    b3 = b_std * jax.random.normal(k6, (10,), jnp.float32)
    return (w1, b1, w2, b2, w3, b3)


def reference_forward(x, params):
    """Pure-JAX reference (same bf16-operand / f32-accumulate recipe)."""
    w1, b1, w2, b2, w3, b3 = params
    bf = lambda a: a.astype(jnp.bfloat16).astype(jnp.float32)
    xf = bf(x.reshape(x.shape[0], -1))
    h1 = jnp.maximum(xf @ bf(w1) + b1.reshape(1, -1), 0.0)
    h2 = jnp.maximum(bf(h1) @ bf(w2) + b2.reshape(1, -1), 0.0)
    return bf(h2) @ bf(w3) + b3.reshape(1, -1)


if __name__ == "__main__":
    key = jax.random.PRNGKey(0)
    kx, kp = jax.random.split(key)

    batch, depth = 2, 32
    # MNIST-like input, NCHW
    x = jax.random.normal(kx, (batch, 1, 28, 28), jnp.float32)
    params = init_params(kp, depth, w_std=0.1, b_std=0.05)

    # One-time parameter prep (hoisted out of the per-call path).
    prepped, meta = prepare_params(params)

    out = net_forward(x, prepped, meta)
    out = jax.block_until_ready(out)

    ref = reference_forward(x, params)
    assert out.shape == (batch, 10), out.shape
    assert jnp.allclose(out, ref, atol=2e-2, rtol=2e-2), (
        float(jnp.max(jnp.abs(out - ref)))
    )
    print("KERNEL_OK")
</pallas_src>

<mosaic_0001>
module attributes {stable_mosaic.version = 11 : i64} {
  func.func @_mlp_kernel(%arg0: i32, %arg1: memref<16x784xbf16, #tpu.memory_space<vmem>>, %arg2: memref<784x128xbf16, #tpu.memory_space<vmem>>, %arg3: memref<1x128xf32, #tpu.memory_space<vmem>>, %arg4: memref<128x128xbf16, #tpu.memory_space<vmem>>, %arg5: memref<1x128xf32, #tpu.memory_space<vmem>>, %arg6: memref<128x128xbf16, #tpu.memory_space<vmem>>, %arg7: memref<1x128xf32, #tpu.memory_space<vmem>>, %arg8: memref<16x128xbf16, #tpu.memory_space<vmem>>) attributes {dimension_semantics = [#tpu.dimension_semantics<parallel>], iteration_bounds = array<i64: 1>, scalar_prefetch = 0 : i64, scratch_operands = 0 : i64, tpu.core_type = #tpu.core_type<tc>, window_params = [{transform_indices = @transform_0, window_bounds = array<i64: 16, 784>}, {pipeline_mode = #tpu.pipeline_mode<synchronous>, transform_indices = @transform_1, window_bounds = array<i64: 784, 128>}, {pipeline_mode = #tpu.pipeline_mode<synchronous>, transform_indices = @transform_2, window_bounds = array<i64: 1, 128>}, {pipeline_mode = #tpu.pipeline_mode<synchronous>, transform_indices = @transform_3, window_bounds = array<i64: 128, 128>}, {pipeline_mode = #tpu.pipeline_mode<synchronous>, transform_indices = @transform_4, window_bounds = array<i64: 1, 128>}, {pipeline_mode = #tpu.pipeline_mode<synchronous>, transform_indices = @transform_5, window_bounds = array<i64: 128, 128>}, {pipeline_mode = #tpu.pipeline_mode<synchronous>, transform_indices = @transform_6, window_bounds = array<i64: 1, 128>}, {transform_indices = @transform_7, window_bounds = array<i64: 16, 128>}]} {
    %c0 = arith.constant 0 : index
    %c0_0 = arith.constant 0 : index
    %0 = vector.load %arg1[%c0, %c0_0] : memref<16x784xbf16, #tpu.memory_space<vmem>>, vector<16x784xbf16>
    %c0_1 = arith.constant 0 : index
    %c0_2 = arith.constant 0 : index
    %1 = vector.load %arg2[%c0_1, %c0_2] : memref<784x128xbf16, #tpu.memory_space<vmem>>, vector<784x128xbf16>
    %cst = arith.constant dense<0.000000e+00> : vector<16x128xf32>
    %2 = tpu.matmul %0, %1, %cst {dimension_numbers = #tpu.dot_dimension_numbers<[1], [0], [0], [1], [0, 0, 1, 1], [], []>} : vector<16x784xbf16>, vector<784x128xbf16>, vector<16x128xf32> -> vector<16x128xf32>
    %c0_3 = arith.constant 0 : index
    %c0_4 = arith.constant 0 : index
    %3 = vector.load %arg3[%c0_3, %c0_4] : memref<1x128xf32, #tpu.memory_space<vmem>>, vector<1x128xf32>
    %4 = vector.broadcast %3 : vector<1x128xf32> to vector<16x128xf32>
    %5 = arith.addf %2, %4 : vector<16x128xf32>
    %cst_5 = arith.constant 0.000000e+00 : f32
    %6 = vector.broadcast %cst_5 : f32 to vector<16x128xf32>
    %7 = arith.maximumf %5, %6 : vector<16x128xf32>
    %8 = arith.truncf %7 : vector<16x128xf32> to vector<16x128xbf16>
    %c0_6 = arith.constant 0 : index
    %c0_7 = arith.constant 0 : index
    %9 = vector.load %arg4[%c0_6, %c0_7] : memref<128x128xbf16, #tpu.memory_space<vmem>>, vector<128x128xbf16>
    %cst_8 = arith.constant dense<0.000000e+00> : vector<16x128xf32>
    %10 = tpu.matmul %8, %9, %cst_8 {dimension_numbers = #tpu.dot_dimension_numbers<[1], [0], [0], [1], [0, 0, 1, 1], [], []>} : vector<16x128xbf16>, vector<128x128xbf16>, vector<16x128xf32> -> vector<16x128xf32>
    %c0_9 = arith.constant 0 : index
    %c0_10 = arith.constant 0 : index
    %11 = vector.load %arg5[%c0_9, %c0_10] : memref<1x128xf32, #tpu.memory_space<vmem>>, vector<1x128xf32>
    %12 = vector.broadcast %11 : vector<1x128xf32> to vector<16x128xf32>
    %13 = arith.addf %10, %12 : vector<16x128xf32>
    %cst_11 = arith.constant 0.000000e+00 : f32
    %14 = vector.broadcast %cst_11 : f32 to vector<16x128xf32>
    %15 = arith.maximumf %13, %14 : vector<16x128xf32>
    %16 = arith.truncf %15 : vector<16x128xf32> to vector<16x128xbf16>
    %c0_12 = arith.constant 0 : index
    %c0_13 = arith.constant 0 : index
    %17 = vector.load %arg6[%c0_12, %c0_13] : memref<128x128xbf16, #tpu.memory_space<vmem>>, vector<128x128xbf16>
    %cst_14 = arith.constant dense<0.000000e+00> : vector<16x128xf32>
    %18 = tpu.matmul %16, %17, %cst_14 {dimension_numbers = #tpu.dot_dimension_numbers<[1], [0], [0], [1], [0, 0, 1, 1], [], []>} : vector<16x128xbf16>, vector<128x128xbf16>, vector<16x128xf32> -> vector<16x128xf32>
    %c0_15 = arith.constant 0 : index
    %c0_16 = arith.constant 0 : index
    %19 = vector.load %arg7[%c0_15, %c0_16] : memref<1x128xf32, #tpu.memory_space<vmem>>, vector<1x128xf32>
    %20 = vector.broadcast %19 : vector<1x128xf32> to vector<16x128xf32>
    %21 = arith.addf %18, %20 : vector<16x128xf32>
    %22 = arith.truncf %21 : vector<16x128xf32> to vector<16x128xbf16>
    %c0_17 = arith.constant 0 : index
    %c0_18 = arith.constant 0 : index
    %23 = vector.load %arg8[%c0_17, %c0_18] : memref<16x128xbf16, #tpu.memory_space<vmem>>, vector<16x128xbf16>
    tpu.vector_store %arg8[%c0_17, %c0_18], %22 {strides = array<i32>} : memref<16x128xbf16, #tpu.memory_space<vmem>>, vector<16x128xbf16>,
    return
  }
  func.func @transform_0(%arg0: i32) -> (i32, i32) {
    %c0_i32 = arith.constant 0 : i32
    %c0_i32_0 = arith.constant 0 : i32
    return %arg0, %c0_i32 : i32, i32
  }
  func.func @transform_1(%arg0: i32) -> (i32, i32) {
    %c0_i32 = arith.constant 0 : i32
    %c0_i32_0 = arith.constant 0 : i32
    %c0_i32_1 = arith.constant 0 : i32
    return %c0_i32, %c0_i32_0 : i32, i32
  }
  func.func @transform_2(%arg0: i32) -> (i32, i32) {
    %c0_i32 = arith.constant 0 : i32
    %c0_i32_0 = arith.constant 0 : i32
    %c0_i32_1 = arith.constant 0 : i32
    return %c0_i32, %c0_i32_0 : i32, i32
  }
  func.func @transform_3(%arg0: i32) -> (i32, i32) {
    %c0_i32 = arith.constant 0 : i32
    %c0_i32_0 = arith.constant 0 : i32
    %c0_i32_1 = arith.constant 0 : i32
    return %c0_i32, %c0_i32_0 : i32, i32
  }
  func.func @transform_4(%arg0: i32) -> (i32, i32) {
    %c0_i32 = arith.constant 0 : i32
    %c0_i32_0 = arith.constant 0 : i32
    %c0_i32_1 = arith.constant 0 : i32
    return %c0_i32, %c0_i32_0 : i32, i32
  }
  func.func @transform_5(%arg0: i32) -> (i32, i32) {
    %c0_i32 = arith.constant 0 : i32
    %c0_i32_0 = arith.constant 0 : i32
    %c0_i32_1 = arith.constant 0 : i32
    return %c0_i32, %c0_i32_0 : i32, i32
  }
  func.func @transform_6(%arg0: i32) -> (i32, i32) {
    %c0_i32 = arith.constant 0 : i32
    %c0_i32_0 = arith.constant 0 : i32
    %c0_i32_1 = arith.constant 0 : i32
    return %c0_i32, %c0_i32_0 : i32, i32
  }
  func.func @transform_7(%arg0: i32) -> (i32, i32) {
    %c0_i32 = arith.constant 0 : i32
    %c0_i32_0 = arith.constant 0 : i32
    return %arg0, %c0_i32 : i32, i32
  }
}

module attributes {stable_mosaic.version = 11 : i64} {
  func.func @_mlp_kernel(%arg0: i32, %arg1: memref<16x784xbf16, #tpu.memory_space<vmem>>, %arg2: memref<784x128xbf16, #tpu.memory_space<vmem>>, %arg3: memref<1x128xf32, #tpu.memory_space<vmem>>, %arg4: memref<128x128xbf16, #tpu.memory_space<vmem>>, %arg5: memref<1x128xf32, #tpu.memory_space<vmem>>, %arg6: memref<128x128xbf16, #tpu.memory_space<vmem>>, %arg7: memref<1x128xf32, #tpu.memory_space<vmem>>, %arg8: memref<16x128xbf16, #tpu.memory_space<vmem>>) attributes {dimension_semantics = [#tpu.dimension_semantics<parallel>], iteration_bounds = array<i64: 1>, scalar_prefetch = 0 : i64, scratch_operands = 0 : i64, tpu.core_type = #tpu.core_type<tc>, window_params = [{transform_indices = @transform_0, window_bounds = array<i64: 16, 784>}, {pipeline_mode = #tpu.pipeline_mode<synchronous>, transform_indices = @transform_1, window_bounds = array<i64: 784, 128>}, {pipeline_mode = #tpu.pipeline_mode<synchronous>, transform_indices = @transform_2, window_bounds = array<i64: 1, 128>}, {pipeline_mode = #tpu.pipeline_mode<synchronous>, transform_indices = @transform_3, window_bounds = array<i64: 128, 128>}, {pipeline_mode = #tpu.pipeline_mode<synchronous>, transform_indices = @transform_4, window_bounds = array<i64: 1, 128>}, {pipeline_mode = #tpu.pipeline_mode<synchronous>, transform_indices = @transform_5, window_bounds = array<i64: 128, 128>}, {pipeline_mode = #tpu.pipeline_mode<synchronous>, transform_indices = @transform_6, window_bounds = array<i64: 1, 128>}, {transform_indices = @transform_7, window_bounds = array<i64: 16, 128>}]} {
    %c0 = arith.constant 0 : index
    %c0_0 = arith.constant 0 : index
    %0 = vector.load %arg1[%c0, %c0_0] : memref<16x784xbf16, #tpu.memory_space<vmem>>, vector<16x784xbf16>
    %c0_1 = arith.constant 0 : index
    %c0_2 = arith.constant 0 : index
    %1 = vector.load %arg2[%c0_1, %c0_2] : memref<784x128xbf16, #tpu.memory_space<vmem>>, vector<784x128xbf16>
    %cst = arith.constant dense<0.000000e+00> : vector<16x128xf32>
    %2 = tpu.matmul %0, %1, %cst {dimension_numbers = #tpu.dot_dimension_numbers<[1], [0], [0], [1], [0, 0, 1, 1], [], []>} : vector<16x784xbf16>, vector<784x128xbf16>, vector<16x128xf32> -> vector<16x128xf32>
    %c0_3 = arith.constant 0 : index
    %c0_4 = arith.constant 0 : index
    %3 = vector.load %arg3[%c0_3, %c0_4] : memref<1x128xf32, #tpu.memory_space<vmem>>, vector<1x128xf32>
    %4 = vector.broadcast %3 : vector<1x128xf32> to vector<16x128xf32>
    %5 = arith.addf %2, %4 : vector<16x128xf32>
    %cst_5 = arith.constant 0.000000e+00 : f32
    %6 = vector.broadcast %cst_5 : f32 to vector<16x128xf32>
    %7 = arith.maximumf %5, %6 : vector<16x128xf32>
    %8 = arith.truncf %7 : vector<16x128xf32> to vector<16x128xbf16>
    %c0_6 = arith.constant 0 : index
    %c0_7 = arith.constant 0 : index
    %9 = vector.load %arg4[%c0_6, %c0_7] : memref<128x128xbf16, #tpu.memory_space<vmem>>, vector<128x128xbf16>
    %cst_8 = arith.constant dense<0.000000e+00> : vector<16x128xf32>
    %10 = tpu.matmul %8, %9, %cst_8 {dimension_numbers = #tpu.dot_dimension_numbers<[1], [0], [0], [1], [0, 0, 1, 1], [], []>} : vector<16x128xbf16>, vector<128x128xbf16>, vector<16x128xf32> -> vector<16x128xf32>
    %c0_9 = arith.constant 0 : index
    %c0_10 = arith.constant 0 : index
    %11 = vector.load %arg5[%c0_9, %c0_10] : memref<1x128xf32, #tpu.memory_space<vmem>>, vector<1x128xf32>
    %12 = vector.broadcast %11 : vector<1x128xf32> to vector<16x128xf32>
    %13 = arith.addf %10, %12 : vector<16x128xf32>
    %cst_11 = arith.constant 0.000000e+00 : f32
    %14 = vector.broadcast %cst_11 : f32 to vector<16x128xf32>
    %15 = arith.maximumf %13, %14 : vector<16x128xf32>
    %16 = arith.truncf %15 : vector<16x128xf32> to vector<16x128xbf16>
    %c0_12 = arith.constant 0 : index
    %c0_13 = arith.constant 0 : index
    %17 = vector.load %arg6[%c0_12, %c0_13] : memref<128x128xbf16, #tpu.memory_space<vmem>>, vector<128x128xbf16>
    %cst_14 = arith.constant dense<0.000000e+00> : vector<16x128xf32>
    %18 = tpu.matmul %16, %17, %cst_14 {dimension_numbers = #tpu.dot_dimension_numbers<[1], [0], [0], [1], [0, 0, 1, 1], [], []>} : vector<16x128xbf16>, vector<128x128xbf16>, vector<16x128xf32> -> vector<16x128xf32>
    %c0_15 = arith.constant 0 : index
    %c0_16 = arith.constant 0 : index
    %19 = vector.load %arg7[%c0_15, %c0_16] : memref<1x128xf32, #tpu.memory_space<vmem>>, vector<1x128xf32>
    %20 = vector.broadcast %19 : vector<1x128xf32> to vector<16x128xf32>
    %21 = arith.addf %18, %20 : vector<16x128xf32>
    %22 = arith.truncf %21 : vector<16x128xf32> to vector<16x128xbf16>
    %c0_17 = arith.constant 0 : index
    %c0_18 = arith.constant 0 : index
    %23 = vector.load %arg8[%c0_17, %c0_18] : memref<16x128xbf16, #tpu.memory_space<vmem>>, vector<16x128xbf16>
    tpu.vector_store %arg8[%c0_17, %c0_18], %22 {strides = array<i32>} : memref<16x128xbf16, #tpu.memory_space<vmem>>, vector<16x128xbf16>,
    return
  }
  func.func @transform_0(%arg0: i32) -> (i32, i32) {
    %c0_i32 = arith.constant 0 : i32
    %c0_i32_0 = arith.constant 0 : i32
    return %arg0, %c0_i32 : i32, i32
  }
  func.func @transform_1(%arg0: i32) -> (i32, i32) {
    %c0_i32 = arith.constant 0 : i32
    %c0_i32_0 = arith.constant 0 : i32
    %c0_i32_1 = arith.constant 0 : i32
    return %c0_i32, %c0_i32_0 : i32, i32
  }
  func.func @transform_2(%arg0: i32) -> (i32, i32) {
    %c0_i32 = arith.constant 0 : i32
    %c0_i32_0 = arith.constant 0 : i32
    %c0_i32_1 = arith.constant 0 : i32
    return %c0_i32, %c0_i32_0 : i32, i32
  }
  func.func @transform_3(%arg0: i32) -> (i32, i32) {
    %c0_i32 = arith.constant 0 : i32
    %c0_i32_0 = arith.constant 0 : i32
    %c0_i32_1 = arith.constant 0 : i32
    return %c0_i32, %c0_i32_0 : i32, i32
  }
  func.func @transform_4(%arg0: i32) -> (i32, i32) {
    %c0_i32 = arith.constant 0 : i32
    %c0_i32_0 = arith.constant 0 : i32
    %c0_i32_1 = arith.constant 0 : i32
    return %c0_i32, %c0_i32_0 : i32, i32
  }
  func.func @transform_5(%arg0: i32) -> (i32, i32) {
    %c0_i32 = arith.constant 0 : i32
    %c0_i32_0 = arith.constant 0 : i32
    %c0_i32_1 = arith.constant 0 : i32
    return %c0_i32, %c0_i32_0 : i32, i32
  }
  func.func @transform_6(%arg0: i32) -> (i32, i32) {
    %c0_i32 = arith.constant 0 : i32
    %c0_i32_0 = arith.constant 0 : i32
    %c0_i32_1 = arith.constant 0 : i32
    return %c0_i32, %c0_i32_0 : i32, i32
  }
  func.func @transform_7(%arg0: i32) -> (i32, i32) {
    %c0_i32 = arith.constant 0 : i32
    %c0_i32_0 = arith.constant 0 : i32
    return %arg0, %c0_i32 : i32, i32
  }
}

</mosaic_0001>

<llo_original>
// kernel: tpu_custom_call.1
$region0: #{tpu_custom_call.1}
  #allocation0 [shape = 'u32[]', space=smem, size = 0x4, offset = 0x4, fixed_abs, tag = 'smem constant byte address 0x4 - core index']
  #allocation1 [shape = 'u32[72,128]{1,0:T(1,128)}', space=vmem, size = 0x9000, scoped, tag = 'internal scratch']
  %s0 = inlined_call_operand.hbm [shape: bf16[16,784], index: 0, kind: input, shape index: {}]
  %s1 = inlined_call_operand.hbm [shape: bf16[784,128], index: 1, kind: input, shape index: {}]
  %s2 = inlined_call_operand.vmem [shape: f32[1,128], index: 2, kind: input, shape index: {}]
  %s3 = inlined_call_operand.hbm [shape: bf16[128,128], index: 3, kind: input, shape index: {}]
  %s4 = inlined_call_operand.vmem [shape: f32[1,128], index: 4, kind: input, shape index: {}]
  %s5 = inlined_call_operand.hbm [shape: bf16[128,128], index: 5, kind: input, shape index: {}]
  %s6 = inlined_call_operand.vmem [shape: f32[1,128], index: 6, kind: input, shape index: {}]
  %s7 = inlined_call_operand.hbm [shape: bf16[16,128], index: 7, kind: output, shape index: {}]
  %s8 = sld [smem:[#allocation0]]
  $region54: #{tpu_custom_call.1} parent=0
    _
  %s10 = ssub.s32 1, %s8
  %s11 = scalar_select 0, %s10, %s8
  $region1: #{tpu_custom_call.1} parent=0
    #allocation2 [shape = 'u8[28672]{0}', space=vmem, size = 0x7000, scoped, tag = 'input window, operand 0, single buffered']
    #allocation3 [shape = 's32[1]{0}', space=sflag, size = 0x4, scoped, tag = 'scoped memory for tpu_custom_call.1']
    #allocation4 [shape = 's32[1]{0}', space=sflag, size = 0x4, scoped, tag = 'scoped memory for tpu_custom_call.1']
    #allocation5 [shape = 'u8[200704]{0}', space=vmem, size = 0x31000, scoped, tag = 'input window, operand 1, single buffered']
    #allocation6 [shape = 's32[1]{0}', space=sflag, size = 0x4, scoped, tag = 'scoped memory for tpu_custom_call.1']
    #allocation7 [shape = 'u8[32768]{0}', space=vmem, size = 0x8000, scoped, tag = 'input window, operand 3, single buffered']
    #allocation8 [shape = 'u8[32768]{0}', space=vmem, size = 0x8000, scoped, tag = 'input window, operand 5, single buffered']
    #allocation9 [shape = 's32[1]{0}', space=sflag, size = 0x4, scoped, tag = 'scoped memory for tpu_custom_call.1']
    #allocation10 [shape = 'u8[4096]{0}', space=vmem, size = 0x1000, scoped, tag = 'output window, operand 0, single buffered']
    %12 = vsyncpa [#allocation3], 0
    %13 = vsyncpa [#allocation6], 0
    %14 = vsyncpa [#allocation9], 0
    %15 = vsyncpa [#allocation4], 0
    // Predicated region
    $region2: #{tpu_custom_call.1} parent=1 // pred_check
      _
    $region3: #{tpu_custom_call.1} parent=1 // pred_check_branch
      %17 = sbr.rel (0) target = $region5
    $region4: #{tpu_custom_call.1} parent=1 // pred_region
      %19 = vsyncadd [#allocation3], 0
      %s20 = sshll.u32 %s0, 4
      %s21 = int_to_ptr.hbm [resolvable:$true] %s20
      %s22 = sshll.u32 [#allocation2], 4
      %s23 = int_to_ptr.vmem [resolvable:$true] %s22
      %28 = dma.hbm_to_vmem [thread:$0]  %s21, 896, %s23, [#allocation3], 448, 448, 28
    $region5: #{tpu_custom_call.1} parent=1 // pred_fallthru
      _
    // Predicated region
    $region6: #{tpu_custom_call.1} parent=1 // pred_check
      _
    $region7: #{tpu_custom_call.1} parent=1 // pred_check_branch
      %30 = sbr.rel (0) target = $region9
    $region8: #{tpu_custom_call.1} parent=1 // pred_region
      %32 = vsyncadd [#allocation6], 0
      %s33 = sshll.u32 %s1, 4
      %s34 = int_to_ptr.hbm [resolvable:$true] %s33
      %s35 = sshll.u32 [#allocation5], 4
      %s36 = int_to_ptr.vmem [resolvable:$true] %s35
      %41 = dma.hbm_to_vmem [thread:$0]  %s34, 6272, %s36, [#allocation6], 64, 64, 4
    $region9: #{tpu_custom_call.1} parent=1 // pred_fallthru
      _
    // Predicated region
    $region10: #{tpu_custom_call.1} parent=1 // pred_check
      _
    $region11: #{tpu_custom_call.1} parent=1 // pred_check_branch
      %43 = sbr.rel (0) target = $region13
    $region12: #{tpu_custom_call.1} parent=1 // pred_region
      _
    $region13: #{tpu_custom_call.1} parent=1 // pred_fallthru
      _
    // Predicated region
    $region14: #{tpu_custom_call.1} parent=1 // pred_check
      _
    $region15: #{tpu_custom_call.1} parent=1 // pred_check_branch
      %45 = sbr.rel (0) target = $region17
    $region16: #{tpu_custom_call.1} parent=1 // pred_region
      %47 = vsyncadd [#allocation6], 0
      %s48 = sshll.u32 %s3, 4
      %s49 = int_to_ptr.hbm [resolvable:$true] %s48
      %s50 = sshll.u32 [#allocation7], 4
      %s51 = int_to_ptr.vmem [resolvable:$true] %s50
      %56 = dma.hbm_to_vmem [thread:$0]  %s49, 1024, %s51, [#allocation6], 64, 64, 4
    $region17: #{tpu_custom_call.1} parent=1 // pred_fallthru
      _
    // Predicated region
    $region18: #{tpu_custom_call.1} parent=1 // pred_check
      _
    $region19: #{tpu_custom_call.1} parent=1 // pred_check_branch
      %58 = sbr.rel (0) target = $region21
    $region20: #{tpu_custom_call.1} parent=1 // pred_region
      _
    $region21: #{tpu_custom_call.1} parent=1 // pred_fallthru
      _
    // Predicated region
    $region22: #{tpu_custom_call.1} parent=1 // pred_check
      _
    $region23: #{tpu_custom_call.1} parent=1 // pred_check_branch
      %60 = sbr.rel (0) target = $region25
    $region24: #{tpu_custom_call.1} parent=1 // pred_region
      %62 = vsyncadd [#allocation9], 0
      %s63 = sshll.u32 %s5, 4
      %s64 = int_to_ptr.hbm [resolvable:$true] %s63
      %s65 = sshll.u32 [#allocation8], 4
      %s66 = int_to_ptr.vmem [resolvable:$true] %s65
      %71 = dma.hbm_to_vmem [thread:$0]  %s64, 1024, %s66, [#allocation9], 64, 64, 4
    $region25: #{tpu_custom_call.1} parent=1 // pred_fallthru
      _
    // Predicated region
    $region26: #{tpu_custom_call.1} parent=1 // pred_check
      _
    $region27: #{tpu_custom_call.1} parent=1 // pred_check_branch
      %73 = sbr.rel (0) target = $region29
    $region28: #{tpu_custom_call.1} parent=1 // pred_region
      _
    $region29: #{tpu_custom_call.1} parent=1 // pred_fallthru
      _
    // Predicated region
    $region30: #{tpu_custom_call.1} parent=1 // pred_check
      _
    $region31: #{tpu_custom_call.1} parent=1 // pred_check_branch
      %75 = sbr.rel (0) target = $region33
    $region32: #{tpu_custom_call.1} parent=1 // pred_region
      %77 = dma.done [#allocation3], 896
    $region33: #{tpu_custom_call.1} parent=1 // pred_fallthru
      _
    // Predicated region
    $region34: #{tpu_custom_call.1} parent=1 // pred_check
      _
    $region35: #{tpu_custom_call.1} parent=1 // pred_check_branch
      %79 = sbr.rel (0) target = $region37
    $region36: #{tpu_custom_call.1} parent=1 // pred_region
      %81 = dma.done [#allocation6], 6272
    $region37: #{tpu_custom_call.1} parent=1 // pred_fallthru
      _
    // Predicated region
    $region38: #{tpu_custom_call.1} parent=1 // pred_check
      _
    $region39: #{tpu_custom_call.1} parent=1 // pred_check_branch
      %83 = sbr.rel (0) target = $region41
    $region40: #{tpu_custom_call.1} parent=1 // pred_region
      %85 = dma.done [#allocation6], 1024
    $region41: #{tpu_custom_call.1} parent=1 // pred_fallthru
      _
    // Predicated region
    $region42: #{tpu_custom_call.1} parent=1 // pred_check
      _
    $region43: #{tpu_custom_call.1} parent=1 // pred_check_branch
      %87 = sbr.rel (0) target = $region45
    $region44: #{tpu_custom_call.1} parent=1 // pred_region
      %89 = dma.done [#allocation9], 1024
    $region45: #{tpu_custom_call.1} parent=1 // pred_fallthru
      _
    %v91 = vld [vmem:[#allocation2] sm:$0xff]
    %v92 = vld [vmem:[#allocation2 + $0x8] sm:$0xff]
    %v93 = vld [vmem:[#allocation2 + $0x10] sm:$0xff]
    %v94 = vld [vmem:[#allocation2 + $0x18] sm:$0xf]
    %v95 = vld [vmem:[#allocation2 + $0x1c] sm:$0xff]
    %v96 = vld [vmem:[#allocation2 + $0x24] sm:$0xff]
    %v97 = vld [vmem:[#allocation2 + $0x2c] sm:$0xff]
    %v98 = vld [vmem:[#allocation2 + $0x34] sm:$0xf]
    %v99 = vld [vmem:[#allocation5] sm:$0xf]
    %v100 = vld [vmem:[#allocation5 + $0x4] sm:$0xf]
    %v101 = vld [vmem:[#allocation5 + $0x8] sm:$0xf]
    %v102 = vld [vmem:[#allocation5 + $0xc] sm:$0xf]
    %v103 = vld [vmem:[#allocation5 + $0x10] sm:$0xf]
    %v104 = vld [vmem:[#allocation5 + $0x14] sm:$0xf]
    %v105 = vld [vmem:[#allocation5 + $0x18] sm:$0xf]
    %v106 = vld [vmem:[#allocation5 + $0x1c] sm:$0xf]
    %v107 = vld [vmem:[#allocation5 + $0x20] sm:$0xf]
    %v108 = vld [vmem:[#allocation5 + $0x24] sm:$0xf]
    %v109 = vld [vmem:[#allocation5 + $0x28] sm:$0xf]
    %v110 = vld [vmem:[#allocation5 + $0x2c] sm:$0xf]
    %v111 = vld [vmem:[#allocation5 + $0x30] sm:$0xf]
    %v112 = vld [vmem:[#allocation5 + $0x34] sm:$0xf]
    %v113 = vld [vmem:[#allocation5 + $0x38] sm:$0xf]
    %v114 = vld [vmem:[#allocation5 + $0x3c] sm:$0xf]
    %v115 = vld [vmem:[#allocation5 + $0x40] sm:$0xf]
    %v116 = vld [vmem:[#allocation5 + $0x44] sm:$0xf]
    %v117 = vld [vmem:[#allocation5 + $0x48] sm:$0xf]
    %v118 = vld [vmem:[#allocation5 + $0x4c] sm:$0xf]
    %v119 = vld [vmem:[#allocation5 + $0x50] sm:$0xf]
    %v120 = vld [vmem:[#allocation5 + $0x54] sm:$0xf]
    %v121 = vld [vmem:[#allocation5 + $0x58] sm:$0xf]
    %v122 = vld [vmem:[#allocation5 + $0x5c] sm:$0xf]
    %v123 = vld [vmem:[#allocation5 + $0x60] sm:$0xf]
    %v124 = vld [vmem:[#allocation5 + $0x64] sm:$0xf]
    %v125 = vld [vmem:[#allocation5 + $0x68] sm:$0xf]
    %v126 = vld [vmem:[#allocation5 + $0x6c] sm:$0xf]
    %v127 = vld [vmem:[#allocation5 + $0x70] sm:$0xf]
    %v128 = vld [vmem:[#allocation5 + $0x74] sm:$0xf]
    %v129 = vld [vmem:[#allocation5 + $0x78] sm:$0xf]
    %v130 = vld [vmem:[#allocation5 + $0x7c] sm:$0xf]
    %v131 = vld [vmem:[#allocation5 + $0x80] sm:$0xf]
    %v132 = vld [vmem:[#allocation5 + $0x84] sm:$0xf]
    %v133 = vld [vmem:[#allocation5 + $0x88] sm:$0xf]
    %v134 = vld [vmem:[#allocation5 + $0x8c] sm:$0xf]
    %v135 = vld [vmem:[#allocation5 + $0x90] sm:$0xf]
    %v136 = vld [vmem:[#allocation5 + $0x94] sm:$0xf]
    %v137 = vld [vmem:[#allocation5 + $0x98] sm:$0xf]
    %v138 = vld [vmem:[#allocation5 + $0x9c] sm:$0xf]
    %v139 = vld [vmem:[#allocation5 + $0xa0] sm:$0xf]
    %v140 = vld [vmem:[#allocation5 + $0xa4] sm:$0xf]
    %v141 = vld [vmem:[#allocation5 + $0xa8] sm:$0xf]
    %v142 = vld [vmem:[#allocation5 + $0xac] sm:$0xf]
    %v143 = vld [vmem:[#allocation5 + $0xb0] sm:$0xf]
    %v144 = vld [vmem:[#allocation5 + $0xb4] sm:$0xf]
    %v145 = vld [vmem:[#allocation5 + $0xb8] sm:$0xf]
    %v146 = vld [vmem:[#allocation5 + $0xbc] sm:$0xf]
    %v147 = vld [vmem:[#allocation5 + $0xc0] sm:$0xf]
    %v148 = vld [vmem:[#allocation5 + $0xc4] sm:$0xf]
    %v149 = vld [vmem:[#allocation5 + $0xc8] sm:$0xf]
    %v150 = vld [vmem:[#allocation5 + $0xcc] sm:$0xf]
    %v151 = vld [vmem:[#allocation5 + $0xd0] sm:$0xf]
    %v152 = vld [vmem:[#allocation5 + $0xd4] sm:$0xf]
    %v153 = vld [vmem:[#allocation5 + $0xd8] sm:$0xf]
    %v154 = vld [vmem:[#allocation5 + $0xdc] sm:$0xf]
    %v155 = vld [vmem:[#allocation5 + $0xe0] sm:$0xf]
    %v156 = vld [vmem:[#allocation5 + $0xe4] sm:$0xf]
    %v157 = vld [vmem:[#allocation5 + $0xe8] sm:$0xf]
    %v158 = vld [vmem:[#allocation5 + $0xec] sm:$0xf]
    %v159 = vld [vmem:[#allocation5 + $0xf0] sm:$0xf]
    %v160 = vld [vmem:[#allocation5 + $0xf4] sm:$0xf]
    %v161 = vld [vmem:[#allocation5 + $0xf8] sm:$0xf]
    %v162 = vld [vmem:[#allocation5 + $0xfc] sm:$0xf]
    %v163 = vld [vmem:[#allocation5 + $0x100] sm:$0xf]
    %v164 = vld [vmem:[#allocation5 + $0x104] sm:$0xf]
    %v165 = vld [vmem:[#allocation5 + $0x108] sm:$0xf]
    %v166 = vld [vmem:[#allocation5 + $0x10c] sm:$0xf]
    %v167 = vld [vmem:[#allocation5 + $0x110] sm:$0xf]
    %v168 = vld [vmem:[#allocation5 + $0x114] sm:$0xf]
    %v169 = vld [vmem:[#allocation5 + $0x118] sm:$0xf]
    %v170 = vld [vmem:[#allocation5 + $0x11c] sm:$0xf]
    %v171 = vld [vmem:[#allocation5 + $0x120] sm:$0xf]
    %v172 = vld [vmem:[#allocation5 + $0x124] sm:$0xf]
    %v173 = vld [vmem:[#allocation5 + $0x128] sm:$0xf]
    %v174 = vld [vmem:[#allocation5 + $0x12c] sm:$0xf]
    %v175 = vld [vmem:[#allocation5 + $0x130] sm:$0xf]
    %v176 = vld [vmem:[#allocation5 + $0x134] sm:$0xf]
    %v177 = vld [vmem:[#allocation5 + $0x138] sm:$0xf]
    %v178 = vld [vmem:[#allocation5 + $0x13c] sm:$0xf]
    %v179 = vld [vmem:[#allocation5 + $0x140] sm:$0xf]
    %v180 = vld [vmem:[#allocation5 + $0x144] sm:$0xf]
    %v181 = vld [vmem:[#allocation5 + $0x148] sm:$0xf]
    %v182 = vld [vmem:[#allocation5 + $0x14c] sm:$0xf]
    %v183 = vld [vmem:[#allocation5 + $0x150] sm:$0xf]
    %v184 = vld [vmem:[#allocation5 + $0x154] sm:$0xf]
    %v185 = vld [vmem:[#allocation5 + $0x158] sm:$0xf]
    %v186 = vld [vmem:[#allocation5 + $0x15c] sm:$0xf]
    %v187 = vld [vmem:[#allocation5 + $0x160] sm:$0xf]
    %v188 = vld [vmem:[#allocation5 + $0x164] sm:$0xf]
    %v189 = vld [vmem:[#allocation5 + $0x168] sm:$0xf]
    %v190 = vld [vmem:[#allocation5 + $0x16c] sm:$0xf]
    %v191 = vld [vmem:[#allocation5 + $0x170] sm:$0xf]
    %v192 = vld [vmem:[#allocation5 + $0x174] sm:$0xf]
    %v193 = vld [vmem:[#allocation5 + $0x178] sm:$0xf]
    %v194 = vld [vmem:[#allocation5 + $0x17c] sm:$0xf]
    %v195 = vld [vmem:[#allocation5 + $0x180] sm:$0xf]
    %v196 = vld [vmem:[#allocation5 + $0x184] sm:$0xf]
    %v197 = vld [vmem:[%s2] sm:$0x1]
    %v199 = vperm.slane %v197, 0
    %v209 = vunpack.c.l.b16 %v91
    %v210 = vunpack.c.h.b16 %v91
    %v211 = vunpack.c.l.b16 %v92
    %v212 = vunpack.c.h.b16 %v92
    %v213 = vunpack.c.l.b16 %v93
    %v214 = vunpack.c.h.b16 %v93
    %v215 = vunpack.c.l.b16 %v94
    %v216 = vunpack.c.l.b16 %v95
    %v217 = vunpack.c.h.b16 %v95
    %v218 = vunpack.c.l.b16 %v96
    %v219 = vunpack.c.h.b16 %v96
    %v220 = vunpack.c.l.b16 %v97
    %v221 = vunpack.c.h.b16 %v97
    %v222 = vunpack.c.l.b16 %v98
    %v223 = vpack.c.b16 %v216, %v209
    %v224 = vpack.c.b16 %v217, %v210
    %v225 = vpack.c.b16 %v218, %v211
    %v226 = vpack.c.b16 %v219, %v212
    %v227 = vpack.c.b16 %v220, %v213
    %v228 = vpack.c.b16 %v221, %v214
    %v229 = vpack.c.b16 %v222, %v215
    %v334 = vunpack.c.l.b16 %v99
    %v335 = vunpack.c.l.b16 %v100
    %v336 = vunpack.c.l.b16 %v101
    %v337 = vunpack.c.l.b16 %v102
    %v338 = vunpack.c.l.b16 %v103
    %v339 = vunpack.c.l.b16 %v104
    %v340 = vunpack.c.l.b16 %v105
    %v341 = vunpack.c.l.b16 %v106
    %v342 = vunpack.c.l.b16 %v107
    %v343 = vunpack.c.l.b16 %v108
    %v344 = vunpack.c.l.b16 %v109
    %v345 = vunpack.c.l.b16 %v110
    %v346 = vunpack.c.l.b16 %v111
    %v347 = vunpack.c.l.b16 %v112
    %v348 = vunpack.c.l.b16 %v113
    %v349 = vunpack.c.l.b16 %v114
    %v350 = vunpack.c.l.b16 %v115
    %v351 = vunpack.c.l.b16 %v116
    %v352 = vunpack.c.l.b16 %v117
    %v353 = vunpack.c.l.b16 %v118
    %v354 = vunpack.c.l.b16 %v119
    %v355 = vunpack.c.l.b16 %v120
    %v356 = vunpack.c.l.b16 %v121
    %v357 = vunpack.c.l.b16 %v122
    %v358 = vunpack.c.l.b16 %v123
    %v359 = vunpack.c.l.b16 %v124
    %v360 = vunpack.c.l.b16 %v125
    %v361 = vunpack.c.l.b16 %v126
    %v362 = vunpack.c.l.b16 %v127
    %v363 = vunpack.c.l.b16 %v128
    %v364 = vunpack.c.l.b16 %v129
    %v365 = vunpack.c.l.b16 %v130
    %v366 = vunpack.c.l.b16 %v131
    %v367 = vunpack.c.l.b16 %v132
    %v368 = vunpack.c.l.b16 %v133
    %v369 = vunpack.c.l.b16 %v134
    %v370 = vunpack.c.l.b16 %v135
    %v371 = vunpack.c.l.b16 %v136
    %v372 = vunpack.c.l.b16 %v137
    %v373 = vunpack.c.l.b16 %v138
    %v374 = vunpack.c.l.b16 %v139
    %v375 = vunpack.c.l.b16 %v140
    %v376 = vunpack.c.l.b16 %v141
    %v377 = vunpack.c.l.b16 %v142
    %v378 = vunpack.c.l.b16 %v143
    %v379 = vunpack.c.l.b16 %v144
    %v380 = vunpack.c.l.b16 %v145
    %v381 = vunpack.c.l.b16 %v146
    %v382 = vunpack.c.l.b16 %v147
    %v383 = vunpack.c.l.b16 %v148
    %v384 = vunpack.c.l.b16 %v149
    %v385 = vunpack.c.l.b16 %v150
    %v386 = vunpack.c.l.b16 %v151
    %v387 = vunpack.c.l.b16 %v152
    %v388 = vunpack.c.l.b16 %v153
    %v389 = vunpack.c.l.b16 %v154
    %v390 = vunpack.c.l.b16 %v155
    %v391 = vunpack.c.l.b16 %v156
    %v392 = vunpack.c.l.b16 %v157
    %v393 = vunpack.c.l.b16 %v158
    %v394 = vunpack.c.l.b16 %v159
    %v395 = vunpack.c.l.b16 %v160
    %v396 = vunpack.c.l.b16 %v161
    %v397 = vunpack.c.l.b16 %v162
    %v398 = vunpack.c.l.b16 %v163
    %v399 = vunpack.c.l.b16 %v164
    %v400 = vunpack.c.l.b16 %v165
    %v401 = vunpack.c.l.b16 %v166
    %v402 = vunpack.c.l.b16 %v167
    %v403 = vunpack.c.l.b16 %v168
    %v404 = vunpack.c.l.b16 %v169
    %v405 = vunpack.c.l.b16 %v170
    %v406 = vunpack.c.l.b16 %v171
    %v407 = vunpack.c.l.b16 %v172
    %v408 = vunpack.c.l.b16 %v173
    %v409 = vunpack.c.l.b16 %v174
    %v410 = vunpack.c.l.b16 %v175
    %v411 = vunpack.c.l.b16 %v176
    %v412 = vunpack.c.l.b16 %v177
    %v413 = vunpack.c.l.b16 %v178
    %v414 = vunpack.c.l.b16 %v179
    %v415 = vunpack.c.l.b16 %v180
    %v416 = vunpack.c.l.b16 %v181
    %v417 = vunpack.c.l.b16 %v182
    %v418 = vunpack.c.l.b16 %v183
    %v419 = vunpack.c.l.b16 %v184
    %v420 = vunpack.c.l.b16 %v185
    %v421 = vunpack.c.l.b16 %v186
    %v422 = vunpack.c.l.b16 %v187
    %v423 = vunpack.c.l.b16 %v188
    %v424 = vunpack.c.l.b16 %v189
    %v425 = vunpack.c.l.b16 %v190
    %v426 = vunpack.c.l.b16 %v191
    %v427 = vunpack.c.l.b16 %v192
    %v428 = vunpack.c.l.b16 %v193
    %v429 = vunpack.c.l.b16 %v194
    %v430 = vunpack.c.l.b16 %v195
    %v431 = vunpack.c.l.b16 %v196
    %v432 = vpack.c.b16 %v335, %v334
    %v433 = vpack.c.b16 %v337, %v336
    %v434 = vpack.c.b16 %v339, %v338
    %v435 = vpack.c.b16 %v341, %v340
    %v436 = vpack.c.b16 %v343, %v342
    %v437 = vpack.c.b16 %v345, %v344
    %v438 = vpack.c.b16 %v347, %v346
    %v439 = vpack.c.b16 %v349, %v348
    %v440 = vpack.c.b16 %v351, %v350
    %v441 = vpack.c.b16 %v353, %v352
    %v442 = vpack.c.b16 %v355, %v354
    %v443 = vpack.c.b16 %v357, %v356
    %v444 = vpack.c.b16 %v359, %v358
    %v445 = vpack.c.b16 %v361, %v360
    %v446 = vpack.c.b16 %v363, %v362
    %v447 = vpack.c.b16 %v365, %v364
    %v448 = vpack.c.b16 %v367, %v366
    %v449 = vpack.c.b16 %v369, %v368
    %v450 = vpack.c.b16 %v371, %v370
    %v451 = vpack.c.b16 %v373, %v372
    %v452 = vpack.c.b16 %v375, %v374
    %v453 = vpack.c.b16 %v377, %v376
    %v454 = vpack.c.b16 %v379, %v378
    %v455 = vpack.c.b16 %v381, %v380
    %v456 = vpack.c.b16 %v383, %v382
    %v457 = vpack.c.b16 %v385, %v384
    %v458 = vpack.c.b16 %v387, %v386
    %v459 = vpack.c.b16 %v389, %v388
    %v460 = vpack.c.b16 %v391, %v390
    %v461 = vpack.c.b16 %v393, %v392
    %v462 = vpack.c.b16 %v395, %v394
    %v463 = vpack.c.b16 %v397, %v396
    %v464 = vpack.c.b16 %v399, %v398
    %v465 = vpack.c.b16 %v401, %v400
    %v466 = vpack.c.b16 %v403, %v402
    %v467 = vpack.c.b16 %v405, %v404
    %v468 = vpack.c.b16 %v407, %v406
    %v469 = vpack.c.b16 %v409, %v408
    %v470 = vpack.c.b16 %v411, %v410
    %v471 = vpack.c.b16 %v413, %v412
    %v472 = vpack.c.b16 %v415, %v414
    %v473 = vpack.c.b16 %v417, %v416
    %v474 = vpack.c.b16 %v419, %v418
    %v475 = vpack.c.b16 %v421, %v420
    %v476 = vpack.c.b16 %v423, %v422
    %v477 = vpack.c.b16 %v425, %v424
    %v478 = vpack.c.b16 %v427, %v426
    %v479 = vpack.c.b16 %v429, %v428
    %v480 = vpack.c.b16 %v431, %v430
    %vm530 = vcmask 130048
    %v532 = vsel %vm530, %v229, 0
    %534 = vmatpush.bf16.msra.mxu0 %v439
    %535 = vmatpush.bf16.msra.mxu0 %v438
    %536 = vmatpush.bf16.msra.mxu0 %v437
    %537 = vmatpush.bf16.msra.mxu0 %v436
    %538 = vmatpush.bf16.msra.mxu0 %v435
    %539 = vmatpush.bf16.msra.mxu0 %v434
    %540 = vmatpush.bf16.msra.mxu0 %v433
    %541 = vmatpush.bf16.msra.mxu0 %v432
    %542 = vmatmul.bf16.gmra.mxu0 %v223
    %v543 = vpop.f32.mrf.mxu0
    %v544 = vadd.f32 %v199, %v543
    %v545 = vpop.f32.mrf.mxu0
    %v546 = vadd.f32 %v199, %v545
    %547 = vdwg.mxu0
    %548 = vmatpush.bf16.msra.mxu0 %v447
    %549 = vmatpush.bf16.msra.mxu0 %v446
    %550 = vmatpush.bf16.msra.mxu0 %v445
    %551 = vmatpush.bf16.msra.mxu0 %v444
    %552 = vmatpush.bf16.msra.mxu0 %v443
    %553 = vmatpush.bf16.msra.mxu0 %v442
    %554 = vmatpush.bf16.msra.mxu0 %v441
    %555 = vmatpush.bf16.msra.mxu0 %v440
    %556 = vmatmul.bf16.gmra.mxu0 %v224
    %v557 = vpop.f32.mrf.mxu0
    %v558 = vadd.f32 %v544, %v557
    %v559 = vpop.f32.mrf.mxu0
    %v560 = vadd.f32 %v546, %v559
    %561 = vdwg.mxu0
    %562 = vmatpush.bf16.msra.mxu0 %v455
    %563 = vmatpush.bf16.msra.mxu0 %v454
    %564 = vmatpush.bf16.msra.mxu0 %v453
    %565 = vmatpush.bf16.msra.mxu0 %v452
    %566 = vmatpush.bf16.msra.mxu0 %v451
    %567 = vmatpush.bf16.msra.mxu0 %v450
    %568 = vmatpush.bf16.msra.mxu0 %v449
    %569 = vmatpush.bf16.msra.mxu0 %v448
    %570 = vmatmul.bf16.gmra.mxu0 %v225
    %v571 = vpop.f32.mrf.mxu0
    %v572 = vadd.f32 %v558, %v571
    %v573 = vpop.f32.mrf.mxu0
    %v574 = vadd.f32 %v560, %v573
    %575 = vdwg.mxu0
    %576 = vmatpush.bf16.msra.mxu0 %v463
    %577 = vmatpush.bf16.msra.mxu0 %v462
    %578 = vmatpush.bf16.msra.mxu0 %v461
    %579 = vmatpush.bf16.msra.mxu0 %v460
    %580 = vmatpush.bf16.msra.mxu0 %v459
    %581 = vmatpush.bf16.msra.mxu0 %v458
    %582 = vmatpush.bf16.msra.mxu0 %v457
    %583 = vmatpush.bf16.msra.mxu0 %v456
    %584 = vmatmul.bf16.gmra.mxu0 %v226
    %v585 = vpop.f32.mrf.mxu0
    %v586 = vadd.f32 %v572, %v585
    %v587 = vpop.f32.mrf.mxu0
    %v588 = vadd.f32 %v574, %v587
    %589 = vdwg.mxu0
    %590 = vmatpush.bf16.msra.mxu0 %v471
    %591 = vmatpush.bf16.msra.mxu0 %v470
    %592 = vmatpush.bf16.msra.mxu0 %v469
    %593 = vmatpush.bf16.msra.mxu0 %v468
    %594 = vmatpush.bf16.msra.mxu0 %v467
    %595 = vmatpush.bf16.msra.mxu0 %v466
    %596 = vmatpush.bf16.msra.mxu0 %v465
    %597 = vmatpush.bf16.msra.mxu0 %v464
    %598 = vmatmul.bf16.gmra.mxu0 %v227
    %v599 = vpop.f32.mrf.mxu0
    %v600 = vadd.f32 %v586, %v599
    %v601 = vpop.f32.mrf.mxu0
    %v602 = vadd.f32 %v588, %v601
    %603 = vdwg.mxu0
    %604 = vmatpush.bf16.msra.mxu0 %v479
    %605 = vmatpush.bf16.msra.mxu0 %v478
    %606 = vmatpush.bf16.msra.mxu0 %v477
    %607 = vmatpush.bf16.msra.mxu0 %v476
    %608 = vmatpush.bf16.msra.mxu0 %v475
    %609 = vmatpush.bf16.msra.mxu0 %v474
    %610 = vmatpush.bf16.msra.mxu0 %v473
    %611 = vmatpush.bf16.msra.mxu0 %v472
    %612 = vmatmul.bf16.gmra.mxu0 %v228
    %v613 = vpop.f32.mrf.mxu0
    %v614 = vadd.f32 %v600, %v613
    %v615 = vpop.f32.mrf.mxu0
    %v616 = vadd.f32 %v602, %v615
    %617 = vdwg.mxu0
    %618 = vmatpush.bf16.msra.mxu0 0
    %619 = vmatpush.bf16.msra.mxu0 0
    %620 = vmatpush.bf16.msra.mxu0 0
    %621 = vmatpush.bf16.msra.mxu0 0
    %622 = vmatpush.bf16.msra.mxu0 0
    %623 = vmatpush.bf16.msra.mxu0 0
    %624 = vmatpush.bf16.msra.mxu0 0
    %625 = vmatpush.bf16.msra.mxu0 %v480
    %626 = vmatmul.bf16.gmra.mxu0 %v532
    %v627 = vpop.f32.mrf.mxu0
    %v628 = vadd.f32 %v614, %v627
    %v629 = vpop.f32.mrf.mxu0
    %v630 = vadd.f32 %v616, %v629
    %631 = vdwg.mxu0
    %v632 = vmax.f32 %v628, 0.0
    %v633 = vmax.f32 %v630, 0.0
    %v634 = vpack.c.bf16 %v633, %v632
    %v635 = vld [vmem:[#allocation7] sm:$0xf]
    %v636 = vld [vmem:[#allocation7 + $0x4] sm:$0xf]
    %v637 = vld [vmem:[#allocation7 + $0x8] sm:$0xf]
    %v638 = vld [vmem:[#allocation7 + $0xc] sm:$0xf]
    %v639 = vld [vmem:[#allocation7 + $0x10] sm:$0xf]
    %v640 = vld [vmem:[#allocation7 + $0x14] sm:$0xf]
    %v641 = vld [vmem:[#allocation7 + $0x18] sm:$0xf]
    %v642 = vld [vmem:[#allocation7 + $0x1c] sm:$0xf]
    %v643 = vld [vmem:[#allocation7 + $0x20] sm:$0xf]
    %v644 = vld [vmem:[#allocation7 + $0x24] sm:$0xf]
    %v645 = vld [vmem:[#allocation7 + $0x28] sm:$0xf]
    %v646 = vld [vmem:[#allocation7 + $0x2c] sm:$0xf]
    %v647 = vld [vmem:[#allocation7 + $0x30] sm:$0xf]
    %v648 = vld [vmem:[#allocation7 + $0x34] sm:$0xf]
    %v649 = vld [vmem:[#allocation7 + $0x38] sm:$0xf]
    %v650 = vld [vmem:[#allocation7 + $0x3c] sm:$0xf]
    %v651 = vld [vmem:[%s4] sm:$0x1]
    %v653 = vperm.slane %v651, 0
    %v671 = vunpack.c.l.b16 %v635
    %v672 = vunpack.c.l.b16 %v636
    %v673 = vunpack.c.l.b16 %v637
    %v674 = vunpack.c.l.b16 %v638
    %v675 = vunpack.c.l.b16 %v639
    %v676 = vunpack.c.l.b16 %v640
    %v677 = vunpack.c.l.b16 %v641
    %v678 = vunpack.c.l.b16 %v642
    %v679 = vunpack.c.l.b16 %v643
    %v680 = vunpack.c.l.b16 %v644
    %v681 = vunpack.c.l.b16 %v645
    %v682 = vunpack.c.l.b16 %v646
    %v683 = vunpack.c.l.b16 %v647
    %v684 = vunpack.c.l.b16 %v648
    %v685 = vunpack.c.l.b16 %v649
    %v686 = vunpack.c.l.b16 %v650
    %v687 = vpack.c.b16 %v672, %v671
    %v688 = vpack.c.b16 %v674, %v673
    %v689 = vpack.c.b16 %v676, %v675
    %v690 = vpack.c.b16 %v678, %v677
    %v691 = vpack.c.b16 %v680, %v679
    %v692 = vpack.c.b16 %v682, %v681
    %v693 = vpack.c.b16 %v684, %v683
    %v694 = vpack.c.b16 %v686, %v685
    %703 = vmatpush.bf16.msra.mxu0 %v694
    %704 = vmatpush.bf16.msra.mxu0 %v693
    %705 = vmatpush.bf16.msra.mxu0 %v692
    %706 = vmatpush.bf16.msra.mxu0 %v691
    %707 = vmatpush.bf16.msra.mxu0 %v690
    %708 = vmatpush.bf16.msra.mxu0 %v689
    %709 = vmatpush.bf16.msra.mxu0 %v688
    %710 = vmatpush.bf16.msra.mxu0 %v687
    %711 = vmatmul.bf16.gmra.mxu0 %v634
    %v712 = vpop.f32.mrf.mxu0
    %v713 = vadd.f32 %v653, %v712
    %v714 = vpop.f32.mrf.mxu0
    %v715 = vadd.f32 %v653, %v714
    %716 = vdwg.mxu0
    %v717 = vmax.f32 %v713, 0.0
    %v718 = vmax.f32 %v715, 0.0
    %v719 = vpack.c.bf16 %v718, %v717
    %v720 = vld [vmem:[#allocation8] sm:$0xf]
    %v721 = vld [vmem:[#allocation8 + $0x4] sm:$0xf]
    %v722 = vld [vmem:[#allocation8 + $0x8] sm:$0xf]
    %v723 = vld [vmem:[#allocation8 + $0xc] sm:$0xf]
    %v724 = vld [vmem:[#allocation8 + $0x10] sm:$0xf]
    %v725 = vld [vmem:[#allocation8 + $0x14] sm:$0xf]
    %v726 = vld [vmem:[#allocation8 + $0x18] sm:$0xf]
    %v727 = vld [vmem:[#allocation8 + $0x1c] sm:$0xf]
    %v728 = vld [vmem:[#allocation8 + $0x20] sm:$0xf]
    %v729 = vld [vmem:[#allocation8 + $0x24] sm:$0xf]
    %v730 = vld [vmem:[#allocation8 + $0x28] sm:$0xf]
    %v731 = vld [vmem:[#allocation8 + $0x2c] sm:$0xf]
    %v732 = vld [vmem:[#allocation8 + $0x30] sm:$0xf]
    %v733 = vld [vmem:[#allocation8 + $0x34] sm:$0xf]
    %v734 = vld [vmem:[#allocation8 + $0x38] sm:$0xf]
    %v735 = vld [vmem:[#allocation8 + $0x3c] sm:$0xf]
    %v736 = vld [vmem:[%s6] sm:$0x1]
    %v738 = vperm.slane %v736, 0
    %v756 = vunpack.c.l.b16 %v720
    %v757 = vunpack.c.l.b16 %v721
    %v758 = vunpack.c.l.b16 %v722
    %v759 = vunpack.c.l.b16 %v723
    %v760 = vunpack.c.l.b16 %v724
    %v761 = vunpack.c.l.b16 %v725
    %v762 = vunpack.c.l.b16 %v726
    %v763 = vunpack.c.l.b16 %v727
    %v764 = vunpack.c.l.b16 %v728
    %v765 = vunpack.c.l.b16 %v729
    %v766 = vunpack.c.l.b16 %v730
    %v767 = vunpack.c.l.b16 %v731
    %v768 = vunpack.c.l.b16 %v732
    %v769 = vunpack.c.l.b16 %v733
    %v770 = vunpack.c.l.b16 %v734
    %v771 = vunpack.c.l.b16 %v735
    %v772 = vpack.c.b16 %v757, %v756
    %v773 = vpack.c.b16 %v759, %v758
    %v774 = vpack.c.b16 %v761, %v760
    %v775 = vpack.c.b16 %v763, %v762
    %v776 = vpack.c.b16 %v765, %v764
    %v777 = vpack.c.b16 %v767, %v766
    %v778 = vpack.c.b16 %v769, %v768
    %v779 = vpack.c.b16 %v771, %v770
    %788 = vmatpush.bf16.msra.mxu0 %v779
    %789 = vmatpush.bf16.msra.mxu0 %v778
    %790 = vmatpush.bf16.msra.mxu0 %v777
    %791 = vmatpush.bf16.msra.mxu0 %v776
    %792 = vmatpush.bf16.msra.mxu0 %v775
    %793 = vmatpush.bf16.msra.mxu0 %v774
    %794 = vmatpush.bf16.msra.mxu0 %v773
    %795 = vmatpush.bf16.msra.mxu0 %v772
    %796 = vmatmul.bf16.gmra.mxu0 %v719
    %v797 = vpop.f32.mrf.mxu0
    %v798 = vadd.f32 %v738, %v797
    %v799 = vpop.f32.mrf.mxu0
    %v800 = vadd.f32 %v738, %v799
    %801 = vdwg.mxu0
    %v802 = vpack.c.bf16 %v798, %v798
    %v803 = vpack.c.bf16 %v800, %v800
    %804 = vst [vmem:[#allocation10] sm:$0xf] %v802
    %805 = vst [vmem:[#allocation10 + $0x4] sm:$0xf] %v803
    // Predicated region
    $region46: #{tpu_custom_call.1} parent=1 // pred_check
      _
    $region47: #{tpu_custom_call.1} parent=1 // pred_check_branch
      %807 = sbr.rel (0) target = $region49
    $region48: #{tpu_custom_call.1} parent=1 // pred_region
      %809 = vsyncadd [#allocation4], 0
      %s810 = sshll.u32 [#allocation10], 4
      %s811 = int_to_ptr.vmem [resolvable:$true] %s810
      %s812 = sshll.u32 %s7, 4
      %s813 = int_to_ptr.hbm [resolvable:$true] %s812
      %818 = dma.vmem_to_hbm [thread:$0]  %s811, 128, %s813, [#allocation4], 64, 64, 4
    $region49: #{tpu_custom_call.1} parent=1 // pred_fallthru
      _
    // Predicated region
    $region50: #{tpu_custom_call.1} parent=1 // pred_check
      _
    $region51: #{tpu_custom_call.1} parent=1 // pred_check_branch
      %820 = sbr.rel (0) target = $region53
    $region52: #{tpu_custom_call.1} parent=1 // pred_region
      %822 = dma.done [#allocation4], 128
    $region53: #{tpu_custom_call.1} parent=1 // pred_fallthru
      _
    %823 = vsyncpa [#allocation3], 1
    %824 = vsyncpa [#allocation6], 1
    %825 = vsyncpa [#allocation9], 1
    %826 = vsyncpa [#allocation4], 1

// kernel: tpu_custom_call.1
$region0: #{tpu_custom_call.1}
  #allocation0 [shape = 'u32[]', space=smem, size = 0x4, offset = 0x4, fixed_abs, tag = 'smem constant byte address 0x4 - core index']
  #allocation1 [shape = 'u32[72,128]{1,0:T(1,128)}', space=vmem, size = 0x9000, scoped, tag = 'internal scratch']
  %s0 = inlined_call_operand.hbm [shape: bf16[16,784], index: 0, kind: input, shape index: {}]
  %s1 = inlined_call_operand.hbm [shape: bf16[784,128], index: 1, kind: input, shape index: {}]
  %s2 = inlined_call_operand.vmem [shape: f32[1,128], index: 2, kind: input, shape index: {}]
  %s3 = inlined_call_operand.hbm [shape: bf16[128,128], index: 3, kind: input, shape index: {}]
  %s4 = inlined_call_operand.vmem [shape: f32[1,128], index: 4, kind: input, shape index: {}]
  %s5 = inlined_call_operand.hbm [shape: bf16[128,128], index: 5, kind: input, shape index: {}]
  %s6 = inlined_call_operand.vmem [shape: f32[1,128], index: 6, kind: input, shape index: {}]
  %s7 = inlined_call_operand.hbm [shape: bf16[16,128], index: 7, kind: output, shape index: {}]
  %s8 = sld [smem:[#allocation0]]
  $region54: #{tpu_custom_call.1} parent=0
    _
  %s10 = ssub.s32 1, %s8
  %s11 = scalar_select 0, %s10, %s8
  $region1: #{tpu_custom_call.1} parent=0
    #allocation2 [shape = 'u8[28672]{0}', space=vmem, size = 0x7000, scoped, tag = 'input window, operand 0, single buffered']
    #allocation3 [shape = 's32[1]{0}', space=sflag, size = 0x4, scoped, tag = 'scoped memory for tpu_custom_call.1']
    #allocation4 [shape = 's32[1]{0}', space=sflag, size = 0x4, scoped, tag = 'scoped memory for tpu_custom_call.1']
    #allocation5 [shape = 'u8[200704]{0}', space=vmem, size = 0x31000, scoped, tag = 'input window, operand 1, single buffered']
    #allocation6 [shape = 's32[1]{0}', space=sflag, size = 0x4, scoped, tag = 'scoped memory for tpu_custom_call.1']
    #allocation7 [shape = 'u8[32768]{0}', space=vmem, size = 0x8000, scoped, tag = 'input window, operand 3, single buffered']
    #allocation8 [shape = 'u8[32768]{0}', space=vmem, size = 0x8000, scoped, tag = 'input window, operand 5, single buffered']
    #allocation9 [shape = 's32[1]{0}', space=sflag, size = 0x4, scoped, tag = 'scoped memory for tpu_custom_call.1']
    #allocation10 [shape = 'u8[4096]{0}', space=vmem, size = 0x1000, scoped, tag = 'output window, operand 0, single buffered']
    %12 = vsyncpa [#allocation3], 0
    %13 = vsyncpa [#allocation6], 0
    %14 = vsyncpa [#allocation9], 0
    %15 = vsyncpa [#allocation4], 0
    // Predicated region
    $region2: #{tpu_custom_call.1} parent=1 // pred_check
      _
    $region3: #{tpu_custom_call.1} parent=1 // pred_check_branch
      %17 = sbr.rel (0) target = $region5
    $region4: #{tpu_custom_call.1} parent=1 // pred_region
      %19 = vsyncadd [#allocation3], 0
      %s20 = sshll.u32 %s0, 4
      %s21 = int_to_ptr.hbm [resolvable:$true] %s20
      %s22 = sshll.u32 [#allocation2], 4
      %s23 = int_to_ptr.vmem [resolvable:$true] %s22
      %28 = dma.hbm_to_vmem [thread:$0]  %s21, 896, %s23, [#allocation3], 448, 448, 28
    $region5: #{tpu_custom_call.1} parent=1 // pred_fallthru
      _
    // Predicated region
    $region6: #{tpu_custom_call.1} parent=1 // pred_check
      _
    $region7: #{tpu_custom_call.1} parent=1 // pred_check_branch
      %30 = sbr.rel (0) target = $region9
    $region8: #{tpu_custom_call.1} parent=1 // pred_region
      %32 = vsyncadd [#allocation6], 0
      %s33 = sshll.u32 %s1, 4
      %s34 = int_to_ptr.hbm [resolvable:$true] %s33
      %s35 = sshll.u32 [#allocation5], 4
      %s36 = int_to_ptr.vmem [resolvable:$true] %s35
      %41 = dma.hbm_to_vmem [thread:$0]  %s34, 6272, %s36, [#allocation6], 64, 64, 4
    $region9: #{tpu_custom_call.1} parent=1 // pred_fallthru
      _
    // Predicated region
    $region10: #{tpu_custom_call.1} parent=1 // pred_check
      _
    $region11: #{tpu_custom_call.1} parent=1 // pred_check_branch
      %43 = sbr.rel (0) target = $region13
    $region12: #{tpu_custom_call.1} parent=1 // pred_region
      _
    $region13: #{tpu_custom_call.1} parent=1 // pred_fallthru
      _
    // Predicated region
    $region14: #{tpu_custom_call.1} parent=1 // pred_check
      _
    $region15: #{tpu_custom_call.1} parent=1 // pred_check_branch
      %45 = sbr.rel (0) target = $region17
    $region16: #{tpu_custom_call.1} parent=1 // pred_region
      %47 = vsyncadd [#allocation6], 0
      %s48 = sshll.u32 %s3, 4
      %s49 = int_to_ptr.hbm [resolvable:$true] %s48
      %s50 = sshll.u32 [#allocation7], 4
      %s51 = int_to_ptr.vmem [resolvable:$true] %s50
      %56 = dma.hbm_to_vmem [thread:$0]  %s49, 1024, %s51, [#allocation6], 64, 64, 4
    $region17: #{tpu_custom_call.1} parent=1 // pred_fallthru
      _
    // Predicated region
    $region18: #{tpu_custom_call.1} parent=1 // pred_check
      _
    $region19: #{tpu_custom_call.1} parent=1 // pred_check_branch
      %58 = sbr.rel (0) target = $region21
    $region20: #{tpu_custom_call.1} parent=1 // pred_region
      _
    $region21: #{tpu_custom_call.1} parent=1 // pred_fallthru
      _
    // Predicated region
    $region22: #{tpu_custom_call.1} parent=1 // pred_check
      _
    $region23: #{tpu_custom_call.1} parent=1 // pred_check_branch
      %60 = sbr.rel (0) target = $region25
    $region24: #{tpu_custom_call.1} parent=1 // pred_region
      %62 = vsyncadd [#allocation9], 0
      %s63 = sshll.u32 %s5, 4
      %s64 = int_to_ptr.hbm [resolvable:$true] %s63
      %s65 = sshll.u32 [#allocation8], 4
      %s66 = int_to_ptr.vmem [resolvable:$true] %s65
      %71 = dma.hbm_to_vmem [thread:$0]  %s64, 1024, %s66, [#allocation9], 64, 64, 4
    $region25: #{tpu_custom_call.1} parent=1 // pred_fallthru
      _
    // Predicated region
    $region26: #{tpu_custom_call.1} parent=1 // pred_check
      _
    $region27: #{tpu_custom_call.1} parent=1 // pred_check_branch
      %73 = sbr.rel (0) target = $region29
    $region28: #{tpu_custom_call.1} parent=1 // pred_region
      _
    $region29: #{tpu_custom_call.1} parent=1 // pred_fallthru
      _
    // Predicated region
    $region30: #{tpu_custom_call.1} parent=1 // pred_check
      _
    $region31: #{tpu_custom_call.1} parent=1 // pred_check_branch
      %75 = sbr.rel (0) target = $region33
    $region32: #{tpu_custom_call.1} parent=1 // pred_region
      %77 = dma.done [#allocation3], 896
    $region33: #{tpu_custom_call.1} parent=1 // pred_fallthru
      _
    // Predicated region
    $region34: #{tpu_custom_call.1} parent=1 // pred_check
      _
    $region35: #{tpu_custom_call.1} parent=1 // pred_check_branch
      %79 = sbr.rel (0) target = $region37
    $region36: #{tpu_custom_call.1} parent=1 // pred_region
      %81 = dma.done [#allocation6], 6272
    $region37: #{tpu_custom_call.1} parent=1 // pred_fallthru
      _
    // Predicated region
    $region38: #{tpu_custom_call.1} parent=1 // pred_check
      _
    $region39: #{tpu_custom_call.1} parent=1 // pred_check_branch
      %83 = sbr.rel (0) target = $region41
    $region40: #{tpu_custom_call.1} parent=1 // pred_region
      %85 = dma.done [#allocation6], 1024
    $region41: #{tpu_custom_call.1} parent=1 // pred_fallthru
      _
    // Predicated region
    $region42: #{tpu_custom_call.1} parent=1 // pred_check
      _
    $region43: #{tpu_custom_call.1} parent=1 // pred_check_branch
      %87 = sbr.rel (0) target = $region45
    $region44: #{tpu_custom_call.1} parent=1 // pred_region
      %89 = dma.done [#allocation9], 1024
    $region45: #{tpu_custom_call.1} parent=1 // pred_fallthru
      _
    %v91 = vld [vmem:[#allocation2] sm:$0xff]
    %v92 = vld [vmem:[#allocation2 + $0x8] sm:$0xff]
    %v93 = vld [vmem:[#allocation2 + $0x10] sm:$0xff]
    %v94 = vld [vmem:[#allocation2 + $0x18] sm:$0xf]
    %v95 = vld [vmem:[#allocation2 + $0x1c] sm:$0xff]
    %v96 = vld [vmem:[#allocation2 + $0x24] sm:$0xff]
    %v97 = vld [vmem:[#allocation2 + $0x2c] sm:$0xff]
    %v98 = vld [vmem:[#allocation2 + $0x34] sm:$0xf]
    %v99 = vld [vmem:[#allocation5] sm:$0xf]
    %v100 = vld [vmem:[#allocation5 + $0x4] sm:$0xf]
    %v101 = vld [vmem:[#allocation5 + $0x8] sm:$0xf]
    %v102 = vld [vmem:[#allocation5 + $0xc] sm:$0xf]
    %v103 = vld [vmem:[#allocation5 + $0x10] sm:$0xf]
    %v104 = vld [vmem:[#allocation5 + $0x14] sm:$0xf]
    %v105 = vld [vmem:[#allocation5 + $0x18] sm:$0xf]
    %v106 = vld [vmem:[#allocation5 + $0x1c] sm:$0xf]
    %v107 = vld [vmem:[#allocation5 + $0x20] sm:$0xf]
    %v108 = vld [vmem:[#allocation5 + $0x24] sm:$0xf]
    %v109 = vld [vmem:[#allocation5 + $0x28] sm:$0xf]
    %v110 = vld [vmem:[#allocation5 + $0x2c] sm:$0xf]
    %v111 = vld [vmem:[#allocation5 + $0x30] sm:$0xf]
    %v112 = vld [vmem:[#allocation5 + $0x34] sm:$0xf]
    %v113 = vld [vmem:[#allocation5 + $0x38] sm:$0xf]
    %v114 = vld [vmem:[#allocation5 + $0x3c] sm:$0xf]
    %v115 = vld [vmem:[#allocation5 + $0x40] sm:$0xf]
    %v116 = vld [vmem:[#allocation5 + $0x44] sm:$0xf]
    %v117 = vld [vmem:[#allocation5 + $0x48] sm:$0xf]
    %v118 = vld [vmem:[#allocation5 + $0x4c] sm:$0xf]
    %v119 = vld [vmem:[#allocation5 + $0x50] sm:$0xf]
    %v120 = vld [vmem:[#allocation5 + $0x54] sm:$0xf]
    %v121 = vld [vmem:[#allocation5 + $0x58] sm:$0xf]
    %v122 = vld [vmem:[#allocation5 + $0x5c] sm:$0xf]
    %v123 = vld [vmem:[#allocation5 + $0x60] sm:$0xf]
    %v124 = vld [vmem:[#allocation5 + $0x64] sm:$0xf]
    %v125 = vld [vmem:[#allocation5 + $0x68] sm:$0xf]
    %v126 = vld [vmem:[#allocation5 + $0x6c] sm:$0xf]
    %v127 = vld [vmem:[#allocation5 + $0x70] sm:$0xf]
    %v128 = vld [vmem:[#allocation5 + $0x74] sm:$0xf]
    %v129 = vld [vmem:[#allocation5 + $0x78] sm:$0xf]
    %v130 = vld [vmem:[#allocation5 + $0x7c] sm:$0xf]
    %v131 = vld [vmem:[#allocation5 + $0x80] sm:$0xf]
    %v132 = vld [vmem:[#allocation5 + $0x84] sm:$0xf]
    %v133 = vld [vmem:[#allocation5 + $0x88] sm:$0xf]
    %v134 = vld [vmem:[#allocation5 + $0x8c] sm:$0xf]
    %v135 = vld [vmem:[#allocation5 + $0x90] sm:$0xf]
    %v136 = vld [vmem:[#allocation5 + $0x94] sm:$0xf]
    %v137 = vld [vmem:[#allocation5 + $0x98] sm:$0xf]
    %v138 = vld [vmem:[#allocation5 + $0x9c] sm:$0xf]
    %v139 = vld [vmem:[#allocation5 + $0xa0] sm:$0xf]
    %v140 = vld [vmem:[#allocation5 + $0xa4] sm:$0xf]
    %v141 = vld [vmem:[#allocation5 + $0xa8] sm:$0xf]
    %v142 = vld [vmem:[#allocation5 + $0xac] sm:$0xf]
    %v143 = vld [vmem:[#allocation5 + $0xb0] sm:$0xf]
    %v144 = vld [vmem:[#allocation5 + $0xb4] sm:$0xf]
    %v145 = vld [vmem:[#allocation5 + $0xb8] sm:$0xf]
    %v146 = vld [vmem:[#allocation5 + $0xbc] sm:$0xf]
    %v147 = vld [vmem:[#allocation5 + $0xc0] sm:$0xf]
    %v148 = vld [vmem:[#allocation5 + $0xc4] sm:$0xf]
    %v149 = vld [vmem:[#allocation5 + $0xc8] sm:$0xf]
    %v150 = vld [vmem:[#allocation5 + $0xcc] sm:$0xf]
    %v151 = vld [vmem:[#allocation5 + $0xd0] sm:$0xf]
    %v152 = vld [vmem:[#allocation5 + $0xd4] sm:$0xf]
    %v153 = vld [vmem:[#allocation5 + $0xd8] sm:$0xf]
    %v154 = vld [vmem:[#allocation5 + $0xdc] sm:$0xf]
    %v155 = vld [vmem:[#allocation5 + $0xe0] sm:$0xf]
    %v156 = vld [vmem:[#allocation5 + $0xe4] sm:$0xf]
    %v157 = vld [vmem:[#allocation5 + $0xe8] sm:$0xf]
    %v158 = vld [vmem:[#allocation5 + $0xec] sm:$0xf]
    %v159 = vld [vmem:[#allocation5 + $0xf0] sm:$0xf]
    %v160 = vld [vmem:[#allocation5 + $0xf4] sm:$0xf]
    %v161 = vld [vmem:[#allocation5 + $0xf8] sm:$0xf]
    %v162 = vld [vmem:[#allocation5 + $0xfc] sm:$0xf]
    %v163 = vld [vmem:[#allocation5 + $0x100] sm:$0xf]
    %v164 = vld [vmem:[#allocation5 + $0x104] sm:$0xf]
    %v165 = vld [vmem:[#allocation5 + $0x108] sm:$0xf]
    %v166 = vld [vmem:[#allocation5 + $0x10c] sm:$0xf]
    %v167 = vld [vmem:[#allocation5 + $0x110] sm:$0xf]
    %v168 = vld [vmem:[#allocation5 + $0x114] sm:$0xf]
    %v169 = vld [vmem:[#allocation5 + $0x118] sm:$0xf]
    %v170 = vld [vmem:[#allocation5 + $0x11c] sm:$0xf]
    %v171 = vld [vmem:[#allocation5 + $0x120] sm:$0xf]
    %v172 = vld [vmem:[#allocation5 + $0x124] sm:$0xf]
    %v173 = vld [vmem:[#allocation5 + $0x128] sm:$0xf]
    %v174 = vld [vmem:[#allocation5 + $0x12c] sm:$0xf]
    %v175 = vld [vmem:[#allocation5 + $0x130] sm:$0xf]
    %v176 = vld [vmem:[#allocation5 + $0x134] sm:$0xf]
    %v177 = vld [vmem:[#allocation5 + $0x138] sm:$0xf]
    %v178 = vld [vmem:[#allocation5 + $0x13c] sm:$0xf]
    %v179 = vld [vmem:[#allocation5 + $0x140] sm:$0xf]
    %v180 = vld [vmem:[#allocation5 + $0x144] sm:$0xf]
    %v181 = vld [vmem:[#allocation5 + $0x148] sm:$0xf]
    %v182 = vld [vmem:[#allocation5 + $0x14c] sm:$0xf]
    %v183 = vld [vmem:[#allocation5 + $0x150] sm:$0xf]
    %v184 = vld [vmem:[#allocation5 + $0x154] sm:$0xf]
    %v185 = vld [vmem:[#allocation5 + $0x158] sm:$0xf]
    %v186 = vld [vmem:[#allocation5 + $0x15c] sm:$0xf]
    %v187 = vld [vmem:[#allocation5 + $0x160] sm:$0xf]
    %v188 = vld [vmem:[#allocation5 + $0x164] sm:$0xf]
    %v189 = vld [vmem:[#allocation5 + $0x168] sm:$0xf]
    %v190 = vld [vmem:[#allocation5 + $0x16c] sm:$0xf]
    %v191 = vld [vmem:[#allocation5 + $0x170] sm:$0xf]
    %v192 = vld [vmem:[#allocation5 + $0x174] sm:$0xf]
    %v193 = vld [vmem:[#allocation5 + $0x178] sm:$0xf]
    %v194 = vld [vmem:[#allocation5 + $0x17c] sm:$0xf]
    %v195 = vld [vmem:[#allocation5 + $0x180] sm:$0xf]
    %v196 = vld [vmem:[#allocation5 + $0x184] sm:$0xf]
    %v197 = vld [vmem:[%s2] sm:$0x1]
    %v199 = vperm.slane %v197, 0
    %v209 = vunpack.c.l.b16 %v91
    %v210 = vunpack.c.h.b16 %v91
    %v211 = vunpack.c.l.b16 %v92
    %v212 = vunpack.c.h.b16 %v92
    %v213 = vunpack.c.l.b16 %v93
    %v214 = vunpack.c.h.b16 %v93
    %v215 = vunpack.c.l.b16 %v94
    %v216 = vunpack.c.l.b16 %v95
    %v217 = vunpack.c.h.b16 %v95
    %v218 = vunpack.c.l.b16 %v96
    %v219 = vunpack.c.h.b16 %v96
    %v220 = vunpack.c.l.b16 %v97
    %v221 = vunpack.c.h.b16 %v97
    %v222 = vunpack.c.l.b16 %v98
    %v223 = vpack.c.b16 %v216, %v209
    %v224 = vpack.c.b16 %v217, %v210
    %v225 = vpack.c.b16 %v218, %v211
    %v226 = vpack.c.b16 %v219, %v212
    %v227 = vpack.c.b16 %v220, %v213
    %v228 = vpack.c.b16 %v221, %v214
    %v229 = vpack.c.b16 %v222, %v215
    %v334 = vunpack.c.l.b16 %v99
    %v335 = vunpack.c.l.b16 %v100
    %v336 = vunpack.c.l.b16 %v101
    %v337 = vunpack.c.l.b16 %v102
    %v338 = vunpack.c.l.b16 %v103
    %v339 = vunpack.c.l.b16 %v104
    %v340 = vunpack.c.l.b16 %v105
    %v341 = vunpack.c.l.b16 %v106
    %v342 = vunpack.c.l.b16 %v107
    %v343 = vunpack.c.l.b16 %v108
    %v344 = vunpack.c.l.b16 %v109
    %v345 = vunpack.c.l.b16 %v110
    %v346 = vunpack.c.l.b16 %v111
    %v347 = vunpack.c.l.b16 %v112
    %v348 = vunpack.c.l.b16 %v113
    %v349 = vunpack.c.l.b16 %v114
    %v350 = vunpack.c.l.b16 %v115
    %v351 = vunpack.c.l.b16 %v116
    %v352 = vunpack.c.l.b16 %v117
    %v353 = vunpack.c.l.b16 %v118
    %v354 = vunpack.c.l.b16 %v119
    %v355 = vunpack.c.l.b16 %v120
    %v356 = vunpack.c.l.b16 %v121
    %v357 = vunpack.c.l.b16 %v122
    %v358 = vunpack.c.l.b16 %v123
    %v359 = vunpack.c.l.b16 %v124
    %v360 = vunpack.c.l.b16 %v125
    %v361 = vunpack.c.l.b16 %v126
    %v362 = vunpack.c.l.b16 %v127
    %v363 = vunpack.c.l.b16 %v128
    %v364 = vunpack.c.l.b16 %v129
    %v365 = vunpack.c.l.b16 %v130
    %v366 = vunpack.c.l.b16 %v131
    %v367 = vunpack.c.l.b16 %v132
    %v368 = vunpack.c.l.b16 %v133
    %v369 = vunpack.c.l.b16 %v134
    %v370 = vunpack.c.l.b16 %v135
    %v371 = vunpack.c.l.b16 %v136
    %v372 = vunpack.c.l.b16 %v137
    %v373 = vunpack.c.l.b16 %v138
    %v374 = vunpack.c.l.b16 %v139
    %v375 = vunpack.c.l.b16 %v140
    %v376 = vunpack.c.l.b16 %v141
    %v377 = vunpack.c.l.b16 %v142
    %v378 = vunpack.c.l.b16 %v143
    %v379 = vunpack.c.l.b16 %v144
    %v380 = vunpack.c.l.b16 %v145
    %v381 = vunpack.c.l.b16 %v146
    %v382 = vunpack.c.l.b16 %v147
    %v383 = vunpack.c.l.b16 %v148
    %v384 = vunpack.c.l.b16 %v149
    %v385 = vunpack.c.l.b16 %v150
    %v386 = vunpack.c.l.b16 %v151
    %v387 = vunpack.c.l.b16 %v152
    %v388 = vunpack.c.l.b16 %v153
    %v389 = vunpack.c.l.b16 %v154
    %v390 = vunpack.c.l.b16 %v155
    %v391 = vunpack.c.l.b16 %v156
    %v392 = vunpack.c.l.b16 %v157
    %v393 = vunpack.c.l.b16 %v158
    %v394 = vunpack.c.l.b16 %v159
    %v395 = vunpack.c.l.b16 %v160
    %v396 = vunpack.c.l.b16 %v161
    %v397 = vunpack.c.l.b16 %v162
    %v398 = vunpack.c.l.b16 %v163
    %v399 = vunpack.c.l.b16 %v164
    %v400 = vunpack.c.l.b16 %v165
    %v401 = vunpack.c.l.b16 %v166
    %v402 = vunpack.c.l.b16 %v167
    %v403 = vunpack.c.l.b16 %v168
    %v404 = vunpack.c.l.b16 %v169
    %v405 = vunpack.c.l.b16 %v170
    %v406 = vunpack.c.l.b16 %v171
    %v407 = vunpack.c.l.b16 %v172
    %v408 = vunpack.c.l.b16 %v173
    %v409 = vunpack.c.l.b16 %v174
    %v410 = vunpack.c.l.b16 %v175
    %v411 = vunpack.c.l.b16 %v176
    %v412 = vunpack.c.l.b16 %v177
    %v413 = vunpack.c.l.b16 %v178
    %v414 = vunpack.c.l.b16 %v179
    %v415 = vunpack.c.l.b16 %v180
    %v416 = vunpack.c.l.b16 %v181
    %v417 = vunpack.c.l.b16 %v182
    %v418 = vunpack.c.l.b16 %v183
    %v419 = vunpack.c.l.b16 %v184
    %v420 = vunpack.c.l.b16 %v185
    %v421 = vunpack.c.l.b16 %v186
    %v422 = vunpack.c.l.b16 %v187
    %v423 = vunpack.c.l.b16 %v188
    %v424 = vunpack.c.l.b16 %v189
    %v425 = vunpack.c.l.b16 %v190
    %v426 = vunpack.c.l.b16 %v191
    %v427 = vunpack.c.l.b16 %v192
    %v428 = vunpack.c.l.b16 %v193
    %v429 = vunpack.c.l.b16 %v194
    %v430 = vunpack.c.l.b16 %v195
    %v431 = vunpack.c.l.b16 %v196
    %v432 = vpack.c.b16 %v335, %v334
    %v433 = vpack.c.b16 %v337, %v336
    %v434 = vpack.c.b16 %v339, %v338
    %v435 = vpack.c.b16 %v341, %v340
    %v436 = vpack.c.b16 %v343, %v342
    %v437 = vpack.c.b16 %v345, %v344
    %v438 = vpack.c.b16 %v347, %v346
    %v439 = vpack.c.b16 %v349, %v348
    %v440 = vpack.c.b16 %v351, %v350
    %v441 = vpack.c.b16 %v353, %v352
    %v442 = vpack.c.b16 %v355, %v354
    %v443 = vpack.c.b16 %v357, %v356
    %v444 = vpack.c.b16 %v359, %v358
    %v445 = vpack.c.b16 %v361, %v360
    %v446 = vpack.c.b16 %v363, %v362
    %v447 = vpack.c.b16 %v365, %v364
    %v448 = vpack.c.b16 %v367, %v366
    %v449 = vpack.c.b16 %v369, %v368
    %v450 = vpack.c.b16 %v371, %v370
    %v451 = vpack.c.b16 %v373, %v372
    %v452 = vpack.c.b16 %v375, %v374
    %v453 = vpack.c.b16 %v377, %v376
    %v454 = vpack.c.b16 %v379, %v378
    %v455 = vpack.c.b16 %v381, %v380
    %v456 = vpack.c.b16 %v383, %v382
    %v457 = vpack.c.b16 %v385, %v384
    %v458 = vpack.c.b16 %v387, %v386
    %v459 = vpack.c.b16 %v389, %v388
    %v460 = vpack.c.b16 %v391, %v390
    %v461 = vpack.c.b16 %v393, %v392
    %v462 = vpack.c.b16 %v395, %v394
    %v463 = vpack.c.b16 %v397, %v396
    %v464 = vpack.c.b16 %v399, %v398
    %v465 = vpack.c.b16 %v401, %v400
    %v466 = vpack.c.b16 %v403, %v402
    %v467 = vpack.c.b16 %v405, %v404
    %v468 = vpack.c.b16 %v407, %v406
    %v469 = vpack.c.b16 %v409, %v408
    %v470 = vpack.c.b16 %v411, %v410
    %v471 = vpack.c.b16 %v413, %v412
    %v472 = vpack.c.b16 %v415, %v414
    %v473 = vpack.c.b16 %v417, %v416
    %v474 = vpack.c.b16 %v419, %v418
    %v475 = vpack.c.b16 %v421, %v420
    %v476 = vpack.c.b16 %v423, %v422
    %v477 = vpack.c.b16 %v425, %v424
    %v478 = vpack.c.b16 %v427, %v426
    %v479 = vpack.c.b16 %v429, %v428
    %v480 = vpack.c.b16 %v431, %v430
    %vm530 = vcmask 130048
    %v532 = vsel %vm530, %v229, 0
    %534 = vmatpush.bf16.msra.mxu0 %v439
    %535 = vmatpush.bf16.msra.mxu0 %v438
    %536 = vmatpush.bf16.msra.mxu0 %v437
    %537 = vmatpush.bf16.msra.mxu0 %v436
    %538 = vmatpush.bf16.msra.mxu0 %v435
    %539 = vmatpush.bf16.msra.mxu0 %v434
    %540 = vmatpush.bf16.msra.mxu0 %v433
    %541 = vmatpush.bf16.msra.mxu0 %v432
    %542 = vmatmul.bf16.gmra.mxu0 %v223
    %v543 = vpop.f32.mrf.mxu0
    %v544 = vadd.f32 %v199, %v543
    %v545 = vpop.f32.mrf.mxu0
    %v546 = vadd.f32 %v199, %v545
    %547 = vdwg.mxu0
    %548 = vmatpush.bf16.msra.mxu0 %v447
    %549 = vmatpush.bf16.msra.mxu0 %v446
    %550 = vmatpush.bf16.msra.mxu0 %v445
    %551 = vmatpush.bf16.msra.mxu0 %v444
    %552 = vmatpush.bf16.msra.mxu0 %v443
    %553 = vmatpush.bf16.msra.mxu0 %v442
    %554 = vmatpush.bf16.msra.mxu0 %v441
    %555 = vmatpush.bf16.msra.mxu0 %v440
    %556 = vmatmul.bf16.gmra.mxu0 %v224
    %v557 = vpop.f32.mrf.mxu0
    %v558 = vadd.f32 %v544, %v557
    %v559 = vpop.f32.mrf.mxu0
    %v560 = vadd.f32 %v546, %v559
    %561 = vdwg.mxu0
    %562 = vmatpush.bf16.msra.mxu0 %v455
    %563 = vmatpush.bf16.msra.mxu0 %v454
    %564 = vmatpush.bf16.msra.mxu0 %v453
    %565 = vmatpush.bf16.msra.mxu0 %v452
    %566 = vmatpush.bf16.msra.mxu0 %v451
    %567 = vmatpush.bf16.msra.mxu0 %v450
    %568 = vmatpush.bf16.msra.mxu0 %v449
    %569 = vmatpush.bf16.msra.mxu0 %v448
    %570 = vmatmul.bf16.gmra.mxu0 %v225
    %v571 = vpop.f32.mrf.mxu0
    %v572 = vadd.f32 %v558, %v571
    %v573 = vpop.f32.mrf.mxu0
    %v574 = vadd.f32 %v560, %v573
    %575 = vdwg.mxu0
    %576 = vmatpush.bf16.msra.mxu0 %v463
    %577 = vmatpush.bf16.msra.mxu0 %v462
    %578 = vmatpush.bf16.msra.mxu0 %v461
    %579 = vmatpush.bf16.msra.mxu0 %v460
    %580 = vmatpush.bf16.msra.mxu0 %v459
    %581 = vmatpush.bf16.msra.mxu0 %v458
    %582 = vmatpush.bf16.msra.mxu0 %v457
    %583 = vmatpush.bf16.msra.mxu0 %v456
    %584 = vmatmul.bf16.gmra.mxu0 %v226
    %v585 = vpop.f32.mrf.mxu0
    %v586 = vadd.f32 %v572, %v585
    %v587 = vpop.f32.mrf.mxu0
    %v588 = vadd.f32 %v574, %v587
    %589 = vdwg.mxu0
    %590 = vmatpush.bf16.msra.mxu0 %v471
    %591 = vmatpush.bf16.msra.mxu0 %v470
    %592 = vmatpush.bf16.msra.mxu0 %v469
    %593 = vmatpush.bf16.msra.mxu0 %v468
    %594 = vmatpush.bf16.msra.mxu0 %v467
    %595 = vmatpush.bf16.msra.mxu0 %v466
    %596 = vmatpush.bf16.msra.mxu0 %v465
    %597 = vmatpush.bf16.msra.mxu0 %v464
    %598 = vmatmul.bf16.gmra.mxu0 %v227
    %v599 = vpop.f32.mrf.mxu0
    %v600 = vadd.f32 %v586, %v599
    %v601 = vpop.f32.mrf.mxu0
    %v602 = vadd.f32 %v588, %v601
    %603 = vdwg.mxu0
    %604 = vmatpush.bf16.msra.mxu0 %v479
    %605 = vmatpush.bf16.msra.mxu0 %v478
    %606 = vmatpush.bf16.msra.mxu0 %v477
    %607 = vmatpush.bf16.msra.mxu0 %v476
    %608 = vmatpush.bf16.msra.mxu0 %v475
    %609 = vmatpush.bf16.msra.mxu0 %v474
    %610 = vmatpush.bf16.msra.mxu0 %v473
    %611 = vmatpush.bf16.msra.mxu0 %v472
    %612 = vmatmul.bf16.gmra.mxu0 %v228
    %v613 = vpop.f32.mrf.mxu0
    %v614 = vadd.f32 %v600, %v613
    %v615 = vpop.f32.mrf.mxu0
    %v616 = vadd.f32 %v602, %v615
    %617 = vdwg.mxu0
    %618 = vmatpush.bf16.msra.mxu0 0
    %619 = vmatpush.bf16.msra.mxu0 0
    %620 = vmatpush.bf16.msra.mxu0 0
    %621 = vmatpush.bf16.msra.mxu0 0
    %622 = vmatpush.bf16.msra.mxu0 0
    %623 = vmatpush.bf16.msra.mxu0 0
    %624 = vmatpush.bf16.msra.mxu0 0
    %625 = vmatpush.bf16.msra.mxu0 %v480
    %626 = vmatmul.bf16.gmra.mxu0 %v532
    %v627 = vpop.f32.mrf.mxu0
    %v628 = vadd.f32 %v614, %v627
    %v629 = vpop.f32.mrf.mxu0
    %v630 = vadd.f32 %v616, %v629
    %631 = vdwg.mxu0
    %v632 = vmax.f32 %v628, 0.0
    %v633 = vmax.f32 %v630, 0.0
    %v634 = vpack.c.bf16 %v633, %v632
    %v635 = vld [vmem:[#allocation7] sm:$0xf]
    %v636 = vld [vmem:[#allocation7 + $0x4] sm:$0xf]
    %v637 = vld [vmem:[#allocation7 + $0x8] sm:$0xf]
    %v638 = vld [vmem:[#allocation7 + $0xc] sm:$0xf]
    %v639 = vld [vmem:[#allocation7 + $0x10] sm:$0xf]
    %v640 = vld [vmem:[#allocation7 + $0x14] sm:$0xf]
    %v641 = vld [vmem:[#allocation7 + $0x18] sm:$0xf]
    %v642 = vld [vmem:[#allocation7 + $0x1c] sm:$0xf]
    %v643 = vld [vmem:[#allocation7 + $0x20] sm:$0xf]
    %v644 = vld [vmem:[#allocation7 + $0x24] sm:$0xf]
    %v645 = vld [vmem:[#allocation7 + $0x28] sm:$0xf]
    %v646 = vld [vmem:[#allocation7 + $0x2c] sm:$0xf]
    %v647 = vld [vmem:[#allocation7 + $0x30] sm:$0xf]
    %v648 = vld [vmem:[#allocation7 + $0x34] sm:$0xf]
    %v649 = vld [vmem:[#allocation7 + $0x38] sm:$0xf]
    %v650 = vld [vmem:[#allocation7 + $0x3c] sm:$0xf]
    %v651 = vld [vmem:[%s4] sm:$0x1]
    %v653 = vperm.slane %v651, 0
    %v671 = vunpack.c.l.b16 %v635
    %v672 = vunpack.c.l.b16 %v636
    %v673 = vunpack.c.l.b16 %v637
    %v674 = vunpack.c.l.b16 %v638
    %v675 = vunpack.c.l.b16 %v639
    %v676 = vunpack.c.l.b16 %v640
    %v677 = vunpack.c.l.b16 %v641
    %v678 = vunpack.c.l.b16 %v642
    %v679 = vunpack.c.l.b16 %v643
    %v680 = vunpack.c.l.b16 %v644
    %v681 = vunpack.c.l.b16 %v645
    %v682 = vunpack.c.l.b16 %v646
    %v683 = vunpack.c.l.b16 %v647
    %v684 = vunpack.c.l.b16 %v648
    %v685 = vunpack.c.l.b16 %v649
    %v686 = vunpack.c.l.b16 %v650
    %v687 = vpack.c.b16 %v672, %v671
    %v688 = vpack.c.b16 %v674, %v673
    %v689 = vpack.c.b16 %v676, %v675
    %v690 = vpack.c.b16 %v678, %v677
    %v691 = vpack.c.b16 %v680, %v679
    %v692 = vpack.c.b16 %v682, %v681
    %v693 = vpack.c.b16 %v684, %v683
    %v694 = vpack.c.b16 %v686, %v685
    %703 = vmatpush.bf16.msra.mxu0 %v694
    %704 = vmatpush.bf16.msra.mxu0 %v693
    %705 = vmatpush.bf16.msra.mxu0 %v692
    %706 = vmatpush.bf16.msra.mxu0 %v691
    %707 = vmatpush.bf16.msra.mxu0 %v690
    %708 = vmatpush.bf16.msra.mxu0 %v689
    %709 = vmatpush.bf16.msra.mxu0 %v688
    %710 = vmatpush.bf16.msra.mxu0 %v687
    %711 = vmatmul.bf16.gmra.mxu0 %v634
    %v712 = vpop.f32.mrf.mxu0
    %v713 = vadd.f32 %v653, %v712
    %v714 = vpop.f32.mrf.mxu0
    %v715 = vadd.f32 %v653, %v714
    %716 = vdwg.mxu0
    %v717 = vmax.f32 %v713, 0.0
    %v718 = vmax.f32 %v715, 0.0
    %v719 = vpack.c.bf16 %v718, %v717
    %v720 = vld [vmem:[#allocation8] sm:$0xf]
    %v721 = vld [vmem:[#allocation8 + $0x4] sm:$0xf]
    %v722 = vld [vmem:[#allocation8 + $0x8] sm:$0xf]
    %v723 = vld [vmem:[#allocation8 + $0xc] sm:$0xf]
    %v724 = vld [vmem:[#allocation8 + $0x10] sm:$0xf]
    %v725 = vld [vmem:[#allocation8 + $0x14] sm:$0xf]
    %v726 = vld [vmem:[#allocation8 + $0x18] sm:$0xf]
    %v727 = vld [vmem:[#allocation8 + $0x1c] sm:$0xf]
    %v728 = vld [vmem:[#allocation8 + $0x20] sm:$0xf]
    %v729 = vld [vmem:[#allocation8 + $0x24] sm:$0xf]
    %v730 = vld [vmem:[#allocation8 + $0x28] sm:$0xf]
    %v731 = vld [vmem:[#allocation8 + $0x2c] sm:$0xf]
    %v732 = vld [vmem:[#allocation8 + $0x30] sm:$0xf]
    %v733 = vld [vmem:[#allocation8 + $0x34] sm:$0xf]
    %v734 = vld [vmem:[#allocation8 + $0x38] sm:$0xf]
    %v735 = vld [vmem:[#allocation8 + $0x3c] sm:$0xf]
    %v736 = vld [vmem:[%s6] sm:$0x1]
    %v738 = vperm.slane %v736, 0
    %v756 = vunpack.c.l.b16 %v720
    %v757 = vunpack.c.l.b16 %v721
    %v758 = vunpack.c.l.b16 %v722
    %v759 = vunpack.c.l.b16 %v723
    %v760 = vunpack.c.l.b16 %v724
    %v761 = vunpack.c.l.b16 %v725
    %v762 = vunpack.c.l.b16 %v726
    %v763 = vunpack.c.l.b16 %v727
    %v764 = vunpack.c.l.b16 %v728
    %v765 = vunpack.c.l.b16 %v729
    %v766 = vunpack.c.l.b16 %v730
    %v767 = vunpack.c.l.b16 %v731
    %v768 = vunpack.c.l.b16 %v732
    %v769 = vunpack.c.l.b16 %v733
    %v770 = vunpack.c.l.b16 %v734
    %v771 = vunpack.c.l.b16 %v735
    %v772 = vpack.c.b16 %v757, %v756
    %v773 = vpack.c.b16 %v759, %v758
    %v774 = vpack.c.b16 %v761, %v760
    %v775 = vpack.c.b16 %v763, %v762
    %v776 = vpack.c.b16 %v765, %v764
    %v777 = vpack.c.b16 %v767, %v766
    %v778 = vpack.c.b16 %v769, %v768
    %v779 = vpack.c.b16 %v771, %v770
    %788 = vmatpush.bf16.msra.mxu0 %v779
    %789 = vmatpush.bf16.msra.mxu0 %v778
    %790 = vmatpush.bf16.msra.mxu0 %v777
    %791 = vmatpush.bf16.msra.mxu0 %v776
    %792 = vmatpush.bf16.msra.mxu0 %v775
    %793 = vmatpush.bf16.msra.mxu0 %v774
    %794 = vmatpush.bf16.msra.mxu0 %v773
    %795 = vmatpush.bf16.msra.mxu0 %v772
    %796 = vmatmul.bf16.gmra.mxu0 %v719
    %v797 = vpop.f32.mrf.mxu0
    %v798 = vadd.f32 %v738, %v797
    %v799 = vpop.f32.mrf.mxu0
    %v800 = vadd.f32 %v738, %v799
    %801 = vdwg.mxu0
    %v802 = vpack.c.bf16 %v798, %v798
    %v803 = vpack.c.bf16 %v800, %v800
    %804 = vst [vmem:[#allocation10] sm:$0xf] %v802
    %805 = vst [vmem:[#allocation10 + $0x4] sm:$0xf] %v803
    // Predicated region
    $region46: #{tpu_custom_call.1} parent=1 // pred_check
      _
    $region47: #{tpu_custom_call.1} parent=1 // pred_check_branch
      %807 = sbr.rel (0) target = $region49
    $region48: #{tpu_custom_call.1} parent=1 // pred_region
      %809 = vsyncadd [#allocation4], 0
      %s810 = sshll.u32 [#allocation10], 4
      %s811 = int_to_ptr.vmem [resolvable:$true] %s810
      %s812 = sshll.u32 %s7, 4
      %s813 = int_to_ptr.hbm [resolvable:$true] %s812
      %818 = dma.vmem_to_hbm [thread:$0]  %s811, 128, %s813, [#allocation4], 64, 64, 4
    $region49: #{tpu_custom_call.1} parent=1 // pred_fallthru
      _
    // Predicated region
    $region50: #{tpu_custom_call.1} parent=1 // pred_check
      _
    $region51: #{tpu_custom_call.1} parent=1 // pred_check_branch
      %820 = sbr.rel (0) target = $region53
    $region52: #{tpu_custom_call.1} parent=1 // pred_region
      %822 = dma.done [#allocation4], 128
    $region53: #{tpu_custom_call.1} parent=1 // pred_fallthru
      _
    %823 = vsyncpa [#allocation3], 1
    %824 = vsyncpa [#allocation6], 1
    %825 = vsyncpa [#allocation9], 1
    %826 = vsyncpa [#allocation4], 1

</llo_original>
